<compile_context>
chip_gen: v7x
topology: tpu7x:2x2x1
jax: 0.10.0
libtpu: 0.0.40
codegen_flags: <defaults>
</compile_context>

<pallas_src>
import jax
import jax.numpy as jnp
from jax.experimental import pallas as pl
from jax.experimental.pallas import tpu as pltpu


# ----------------------------------------------------------------------------
# Fused kernel: both attentions + MLP + residual + LayerNorm, one lane-dense store
# ----------------------------------------------------------------------------
def fused_block_kernel(acts_ref, mnb_ref, ent_ref, wqkv_ref, wmlpv_ref, out_ref):
    f32 = jnp.float32
    SB2, N, _ = mnb_ref.shape          # (4B, N, N): [mask_left; mask_right; bias_left; bias_right]
    SB = SB2 // 2                      # side-batch = 2B  (left sides then right sides)
    C = acts_ref.shape[-1]
    D = 2 * C
    B = ent_ref.shape[0]
    R = SB * N                         # rows per projection group

    acts = acts_ref[...]               # (3R, C): [q-src | k-src | v-src] row blocks
    wqkv = wqkv_ref[...]               # (3C, C): [ (Wb@Wq)^T*scale ; Wk^T ; Wv^T ]

    # Three row-stacked projections; every split is a sublane-tile-aligned row slice.
    q3 = jnp.dot(acts[0:R], wqkv[0:C],
                 preferred_element_type=f32).reshape(SB, N, C)
    k3 = jnp.dot(acts[R:2 * R], wqkv[C:2 * C],
                 preferred_element_type=f32).reshape(SB, N, C)
    v3 = jnp.dot(acts[2 * R:3 * R], wqkv[2 * C:3 * C],
                 preferred_element_type=f32).reshape(SB, N, C)

    # Bilinear scores for both sides in one batched matmul; mask applied as a
    # precomputed multiply+add (elementwise-exact masked_fill(-1e9) for {0,1} masks).
    mnb = mnb_ref[...]
    scores = jnp.einsum('sqc,skc->sqk', q3, k3, preferred_element_type=f32)  # (SB, N, N)
    masked = scores * mnb[0:SB] + mnb[SB:2 * SB]

    # attn.mean(dim=-2) over queries, then softmax over keys.
    logits = jnp.mean(masked, axis=1, keepdims=True)                         # (SB, 1, N)
    logits = logits - jnp.max(logits, axis=-1, keepdims=True)
    e = jnp.exp(logits)
    attn = e / jnp.sum(e, axis=-1, keepdims=True)                            # (SB, 1, N)
    ctx = jnp.einsum('sqk,skc->sqc', attn, v3,
                     preferred_element_type=f32)[:, 0, :]                    # (SB, C)

    # MLP (attention output projection Wp/bp is folded into W1/b1 host-side).
    wmlpv = wmlpv_ref[...]             # (2D+24, D): [W1l; W1r; W2; b1; ln_g; ln_b] rows
    cl, cr = ctx[0:B], ctx[B:SB]       # context_l, context_r (never leave vregs)
    h = (jnp.dot(cl, wmlpv[0:C], preferred_element_type=f32)
         + jnp.dot(cr, wmlpv[C:D], preferred_element_type=f32)
         + wmlpv[2 * D:2 * D + 1])
    h = jnp.maximum(h, 0.0)
    ccl = jnp.dot(h, wmlpv[D:2 * D], preferred_element_type=f32)             # (B, D)

    # Residual + LayerNorm (entity_left|entity_right pre-concatenated host-side).
    x = ccl + ent_ref[...]
    mu = jnp.mean(x, axis=-1, keepdims=True)
    xc = x - mu
    var = jnp.mean(xc * xc, axis=-1, keepdims=True)
    y = (xc * jax.lax.rsqrt(var + f32(1e-5)) * wmlpv[2 * D + 8:2 * D + 9]
         + wmlpv[2 * D + 16:2 * D + 17])                                     # (B, D)

    # Single lane-dense (B, 4C) = (B, 128) store: [LN output | context_CL].
    out_ref[...] = jnp.concatenate([y, ccl], axis=-1)


# ----------------------------------------------------------------------------
# One-time parameter preparation (all transposes / algebraic folds hoisted here)
# ----------------------------------------------------------------------------
def prepare_params(params):
    C = params["wq"].shape[0]
    D = 2 * C
    f32 = jnp.float32
    scale = f32(float(C) ** -0.5)                      # num_heads=1 -> head_dim = C

    # Attention projections; the bilinear weight and softmax scale fold into Wq:
    #   (q @ Wq^T) @ Wb^T * scale == q @ ((Wb @ Wq)^T * scale)
    wqb_t = (params["wb"] @ params["wq"]).T * scale                         # (C, C)
    w_qkv = jnp.concatenate([wqb_t, params["wk"].T, params["wv"].T], axis=0)  # (3C, C)

    # Fold the attention output projection (Wp, bp) into the first MLP layer:
    #   cl @ W1l^T = (raw_l @ Wp^T + bp) @ W1l^T = raw_l @ (Wp^T @ W1l^T) + bp @ W1l^T
    w1l_t = params["w1"][:, :C].T                                           # (C, D)
    w1r_t = params["w1"][:, C:].T                                           # (C, D)
    wp_t = params["wp"].T
    bp = params["bp"].reshape(1, C)
    w1l_fold = wp_t @ w1l_t                                                 # (C, D)
    w1r_fold = wp_t @ w1r_t                                                 # (C, D)
    b1_fold = params["b1"].reshape(1, D) + bp @ (w1l_t + w1r_t)             # (1, D)

    def row8(v):  # place a (1, D) row at a sublane-tile-aligned offset (pad to 8 rows)
        return jnp.concatenate([v, jnp.zeros((7, D), f32)], axis=0)

    w_mlpv = jnp.concatenate(
        [w1l_fold, w1r_fold, params["w2"].T,
         row8(b1_fold),
         row8(params["ln_g"].reshape(1, D)),
         row8(params["ln_b"].reshape(1, D))],
        axis=0)                                                             # (2D+24, D)
    return {"w_qkv": w_qkv.astype(f32), "w_mlpv": w_mlpv.astype(f32)}


# ----------------------------------------------------------------------------
# Full block (single pallas_call, 5 operands, 1 lane-dense output)
# ----------------------------------------------------------------------------
@jax.jit
def context_attention_block(prepped, entity_left, entity_right,
                            ent_embeds_left, ent_embeds_right,
                            V_head, V_tail, mask_left, mask_right):
    B, N, C = ent_embeds_left.shape
    D = 2 * C
    f32 = jnp.float32

    eel = ent_embeds_left.reshape(B * N, C).astype(f32)
    eer = ent_embeds_right.reshape(B * N, C).astype(f32)
    vh = V_head.reshape(B * N, C).astype(f32)
    vt = V_tail.reshape(B * N, C).astype(f32)
    # Row-stacked activations: [q-src (eer;eel) | k-src (eel;eer) | v-src (vh;vt)]
    # Side-batch order: s = 0..B-1 -> left attention, s = B..2B-1 -> right attention.
    acts = jnp.concatenate([eer, eel, eel, eer, vh, vt], axis=0)            # (6BN, C)

    mask_all = jnp.concatenate([mask_left, mask_right], axis=0).astype(f32)  # (2B, N, N)
    nbias = (mask_all - 1.0) * f32(1e9)    # exact masked_fill(-1e9) addend for {0,1} masks
    mnb = jnp.concatenate([mask_all, nbias], axis=0)                         # (4B, N, N)

    ent_cat = jnp.concatenate([entity_left, entity_right], axis=-1).astype(f32)  # (B, 2C)

    vmem = lambda: pl.BlockSpec(memory_space=pltpu.MemorySpace.VMEM)
    operands = (acts, mnb, ent_cat, prepped["w_qkv"], prepped["w_mlpv"])
    out = pl.pallas_call(
        fused_block_kernel,
        in_specs=[vmem() for _ in operands],
        out_specs=vmem(),
        out_shape=jax.ShapeDtypeStruct((B, 4 * C), f32),
    )(*operands)

    # Free XLA lane slices of the single lane-dense output slab [y | context_CL].
    emb_left, emb_right, ccl = out[:, :C], out[:, C:D], out[:, D:]
    return emb_left, emb_right, ccl


# ----------------------------------------------------------------------------
# Pure-JAX reference (mirrors the PyTorch forward, eval mode) for verification
# ----------------------------------------------------------------------------
def ref_block(params, el, er, eel, eer, vh, vt, ml, mr):
    p = params
    C = el.shape[-1]
    scale = float(C) ** -0.5

    def attn(q, k, v, mask):
        ql = q @ p["wq"].T
        kl = k @ p["wk"].T
        vl = v @ p["wv"].T
        s = jnp.einsum("bnc,bmc->bnm", ql @ p["wb"].T, kl) * scale
        s = jnp.where(mask == 0, -1e9, s)
        a = jax.nn.softmax(jnp.mean(s, axis=1), axis=-1)
        return jnp.einsum("bn,bnc->bc", a, vl) @ p["wp"].T + p["bp"]

    cl = attn(eer, eel, vh, ml)
    cr = attn(eel, eer, vt, mr)
    concat = jnp.concatenate([cl, cr], axis=-1)
    h = jnp.maximum(concat @ p["w1"].T + p["b1"], 0.0)
    ccl = h @ p["w2"].T
    x = ccl + jnp.concatenate([el, er], axis=-1)
    mu = x.mean(-1, keepdims=True)
    var = ((x - mu) ** 2).mean(-1, keepdims=True)
    y = (x - mu) / jnp.sqrt(var + 1e-5) * p["ln_g"] + p["ln_b"]
    return y[:, :C], y[:, C:], ccl


# ----------------------------------------------------------------------------
# Main
# ----------------------------------------------------------------------------
if __name__ == "__main__":
    B, N, C = 2, 8, 32          # batch, max_neighbor, embedding_size (num_heads=1)
    D = 2 * C
    key = jax.random.PRNGKey(0)
    ks = jax.random.split(key, 20)

    params = {
        "wq": jax.random.normal(ks[0], (C, C), jnp.float32) * (1.0 / C) ** 0.5,
        "wk": jax.random.normal(ks[1], (C, C), jnp.float32) * (1.0 / C) ** 0.5,
        "wv": jax.random.normal(ks[2], (C, C), jnp.float32) * (1.0 / C) ** 0.5,
        "wb": jax.random.normal(ks[3], (C, C), jnp.float32) * (1.0 / C) ** 0.5,  # Bilinear_att
        "wp": jax.random.normal(ks[4], (C, C), jnp.float32) * (1.0 / C) ** 0.5,  # proj weight
        "bp": jax.random.normal(ks[5], (C,), jnp.float32) * 0.01,                # proj bias
        "w1": jax.random.normal(ks[6], (D, D), jnp.float32) * (2.0 / (2 * D)) ** 0.5,  # xavier
        "b1": jnp.zeros((D,), jnp.float32),
        "w2": jax.random.normal(ks[7], (D, D), jnp.float32) * (2.0 / (2 * D)) ** 0.5,  # xavier
        "ln_g": jnp.ones((D,), jnp.float32),
        "ln_b": jnp.zeros((D,), jnp.float32),
    }

    entity_left = jax.random.normal(ks[8], (B, C), jnp.float32)
    entity_right = jax.random.normal(ks[9], (B, C), jnp.float32)
    ent_embeds_left = jax.random.normal(ks[10], (B, N, C), jnp.float32)
    ent_embeds_right = jax.random.normal(ks[11], (B, N, C), jnp.float32)
    V_head = jax.random.normal(ks[12], (B, N, C), jnp.float32)
    V_tail = jax.random.normal(ks[13], (B, N, C), jnp.float32)
    mask_left = (jax.random.uniform(ks[14], (B, N, N)) > 0.3).astype(jnp.float32)
    mask_right = (jax.random.uniform(ks[15], (B, N, N)) > 0.3).astype(jnp.float32)

    prepped = prepare_params(params)     # one-time weight folding / packing
    embl, embr, ccl = context_attention_block(
        prepped, entity_left, entity_right, ent_embeds_left, ent_embeds_right,
        V_head, V_tail, mask_left, mask_right)
    jax.block_until_ready((embl, embr, ccl))

    r_embl, r_embr, r_ccl = ref_block(
        params, entity_left, entity_right, ent_embeds_left, ent_embeds_right,
        V_head, V_tail, mask_left, mask_right)

    assert jnp.allclose(embl, r_embl, atol=1e-4, rtol=1e-4)
    assert jnp.allclose(embr, r_embr, atol=1e-4, rtol=1e-4)
    assert jnp.allclose(ccl, r_ccl, atol=1e-4, rtol=1e-4)

    print("KERNEL_OK")
</pallas_src>

<mosaic_0001>
module attributes {stable_mosaic.version = 11 : i64} {
  func.func @fused_block_kernel(%arg0: memref<96x32xf32, #tpu.memory_space<vmem>>, %arg1: memref<8x8x8xf32, #tpu.memory_space<vmem>>, %arg2: memref<2x64xf32, #tpu.memory_space<vmem>>, %arg3: memref<96x32xf32, #tpu.memory_space<vmem>>, %arg4: memref<152x64xf32, #tpu.memory_space<vmem>>, %arg5: memref<2x128xf32, #tpu.memory_space<vmem>>) attributes {dimension_semantics = [], scalar_prefetch = 0 : i64, scratch_operands = 0 : i64, tpu.core_type = #tpu.core_type<tc>} {
    %c0 = arith.constant 0 : index
    %c0_0 = arith.constant 0 : index
    %0 = vector.load %arg0[%c0, %c0_0] : memref<96x32xf32, #tpu.memory_space<vmem>>, vector<96x32xf32>
    %c0_1 = arith.constant 0 : index
    %c0_2 = arith.constant 0 : index
    %1 = vector.load %arg3[%c0_1, %c0_2] : memref<96x32xf32, #tpu.memory_space<vmem>>, vector<96x32xf32>
    %2 = vector.extract_strided_slice %0 {offsets = [0, 0], sizes = [32, 32], strides = [1, 1]} : vector<96x32xf32> to vector<32x32xf32>
    %3 = vector.extract_strided_slice %1 {offsets = [0, 0], sizes = [32, 32], strides = [1, 1]} : vector<96x32xf32> to vector<32x32xf32>
    %cst = arith.constant dense<0.000000e+00> : vector<32x32xf32>
    %4 = tpu.matmul %2, %3, %cst {dimension_numbers = #tpu.dot_dimension_numbers<[1], [0], [0], [1], [0, 0, 1, 1], [], []>} : vector<32x32xf32>, vector<32x32xf32>, vector<32x32xf32> -> vector<32x32xf32>
    %5 = vector.shape_cast %4 : vector<32x32xf32> to vector<4x8x32xf32>
    %6 = vector.extract_strided_slice %0 {offsets = [32, 0], sizes = [32, 32], strides = [1, 1]} : vector<96x32xf32> to vector<32x32xf32>
    %7 = vector.extract_strided_slice %1 {offsets = [32, 0], sizes = [32, 32], strides = [1, 1]} : vector<96x32xf32> to vector<32x32xf32>
    %cst_3 = arith.constant dense<0.000000e+00> : vector<32x32xf32>
    %8 = tpu.matmul %6, %7, %cst_3 {dimension_numbers = #tpu.dot_dimension_numbers<[1], [0], [0], [1], [0, 0, 1, 1], [], []>} : vector<32x32xf32>, vector<32x32xf32>, vector<32x32xf32> -> vector<32x32xf32>
    %9 = vector.shape_cast %8 : vector<32x32xf32> to vector<4x8x32xf32>
    %10 = vector.extract_strided_slice %0 {offsets = [64, 0], sizes = [32, 32], strides = [1, 1]} : vector<96x32xf32> to vector<32x32xf32>
    %11 = vector.extract_strided_slice %1 {offsets = [64, 0], sizes = [32, 32], strides = [1, 1]} : vector<96x32xf32> to vector<32x32xf32>
    %cst_4 = arith.constant dense<0.000000e+00> : vector<32x32xf32>
    %12 = tpu.matmul %10, %11, %cst_4 {dimension_numbers = #tpu.dot_dimension_numbers<[1], [0], [0], [1], [0, 0, 1, 1], [], []>} : vector<32x32xf32>, vector<32x32xf32>, vector<32x32xf32> -> vector<32x32xf32>
    %13 = vector.shape_cast %12 : vector<32x32xf32> to vector<4x8x32xf32>
    %c0_5 = arith.constant 0 : index
    %c0_6 = arith.constant 0 : index
    %c0_7 = arith.constant 0 : index
    %14 = vector.load %arg1[%c0_5, %c0_6, %c0_7] : memref<8x8x8xf32, #tpu.memory_space<vmem>>, vector<8x8x8xf32>
    "tpu.trace_start"() <{level = 10 : i32, message = "sqc,skc->sqk"}> : () -> ()
    %cst_8 = arith.constant dense<0.000000e+00> : vector<4x8x8xf32>
    %15 = tpu.matmul %5, %9, %cst_8 {dimension_numbers = #tpu.dot_dimension_numbers<[2], [2], [1], [1], [0, 0, 0, 1, 1, 1], [0], [0]>} : vector<4x8x32xf32>, vector<4x8x32xf32>, vector<4x8x8xf32> -> vector<4x8x8xf32>
    "tpu.trace_stop"() : () -> ()
    %16 = vector.extract_strided_slice %14 {offsets = [0, 0, 0], sizes = [4, 8, 8], strides = [1, 1, 1]} : vector<8x8x8xf32> to vector<4x8x8xf32>
    %17 = arith.mulf %15, %16 : vector<4x8x8xf32>
    %18 = vector.extract_strided_slice %14 {offsets = [4, 0, 0], sizes = [4, 8, 8], strides = [1, 1, 1]} : vector<8x8x8xf32> to vector<4x8x8xf32>
    %19 = arith.addf %17, %18 : vector<4x8x8xf32>
    %cst_9 = arith.constant dense<0.000000e+00> : vector<4x8xf32>
    %20 = vector.multi_reduction <add>, %19, %cst_9 [1] : vector<4x8x8xf32> to vector<4x8xf32>
    %21 = vector.shape_cast %20 : vector<4x8xf32> to vector<4x1x8xf32>
    %cst_10 = arith.constant 8.000000e+00 : f32
    %22 = vector.broadcast %cst_10 : f32 to vector<4x1x8xf32>
    %23 = arith.divf %21, %22 : vector<4x1x8xf32>
    %cst_11 = arith.constant dense<0xFF800000> : vector<4x1xf32>
    %24 = vector.multi_reduction <maximumf>, %23, %cst_11 [2] : vector<4x1x8xf32> to vector<4x1xf32>
    %25 = vector.shape_cast %24 : vector<4x1xf32> to vector<4x1x1xf32>
    %26 = vector.broadcast %25 : vector<4x1x1xf32> to vector<4x1x8xf32>
    %27 = arith.subf %23, %26 : vector<4x1x8xf32>
    %28 = math.exp %27 : vector<4x1x8xf32>
    %cst_12 = arith.constant dense<0.000000e+00> : vector<4x1xf32>
    %29 = vector.multi_reduction <add>, %28, %cst_12 [2] : vector<4x1x8xf32> to vector<4x1xf32>
    %30 = vector.shape_cast %29 : vector<4x1xf32> to vector<4x1x1xf32>
    %31 = vector.broadcast %30 : vector<4x1x1xf32> to vector<4x1x8xf32>
    %32 = arith.divf %28, %31 : vector<4x1x8xf32>
    "tpu.trace_start"() <{level = 10 : i32, message = "sqk,skc->sqc"}> : () -> ()
    %cst_13 = arith.constant dense<0.000000e+00> : vector<4x1x32xf32>
    %33 = tpu.matmul %32, %13, %cst_13 {dimension_numbers = #tpu.dot_dimension_numbers<[2], [1], [1], [2], [0, 0, 0, 1, 1, 2], [0], [0]>} : vector<4x1x8xf32>, vector<4x8x32xf32>, vector<4x1x32xf32> -> vector<4x1x32xf32>
    "tpu.trace_stop"() : () -> ()
    %34 = vector.shape_cast %33 : vector<4x1x32xf32> to vector<4x32xf32>
    %c0_14 = arith.constant 0 : index
    %c0_15 = arith.constant 0 : index
    %35 = vector.load %arg4[%c0_14, %c0_15] : memref<152x64xf32, #tpu.memory_space<vmem>>, vector<152x64xf32>
    %36 = vector.extract_strided_slice %34 {offsets = [0, 0], sizes = [2, 32], strides = [1, 1]} : vector<4x32xf32> to vector<2x32xf32>
    %37 = vector.extract_strided_slice %34 {offsets = [2, 0], sizes = [2, 32], strides = [1, 1]} : vector<4x32xf32> to vector<2x32xf32>
    %38 = vector.extract_strided_slice %35 {offsets = [0, 0], sizes = [32, 64], strides = [1, 1]} : vector<152x64xf32> to vector<32x64xf32>
    %cst_16 = arith.constant dense<0.000000e+00> : vector<2x64xf32>
    %39 = tpu.matmul %36, %38, %cst_16 {dimension_numbers = #tpu.dot_dimension_numbers<[1], [0], [0], [1], [0, 0, 1, 1], [], []>} : vector<2x32xf32>, vector<32x64xf32>, vector<2x64xf32> -> vector<2x64xf32>
    %40 = vector.extract_strided_slice %35 {offsets = [32, 0], sizes = [32, 64], strides = [1, 1]} : vector<152x64xf32> to vector<32x64xf32>
    %cst_17 = arith.constant dense<0.000000e+00> : vector<2x64xf32>
    %41 = tpu.matmul %37, %40, %cst_17 {dimension_numbers = #tpu.dot_dimension_numbers<[1], [0], [0], [1], [0, 0, 1, 1], [], []>} : vector<2x32xf32>, vector<32x64xf32>, vector<2x64xf32> -> vector<2x64xf32>
    %42 = arith.addf %39, %41 : vector<2x64xf32>
    %43 = vector.extract_strided_slice %35 {offsets = [128, 0], sizes = [1, 64], strides = [1, 1]} : vector<152x64xf32> to vector<1x64xf32>
    %44 = vector.broadcast %43 : vector<1x64xf32> to vector<2x64xf32>
    %45 = arith.addf %42, %44 : vector<2x64xf32>
    %cst_18 = arith.constant 0.000000e+00 : f32
    %46 = vector.broadcast %cst_18 : f32 to vector<2x64xf32>
    %47 = arith.maximumf %45, %46 : vector<2x64xf32>
    %48 = vector.extract_strided_slice %35 {offsets = [64, 0], sizes = [64, 64], strides = [1, 1]} : vector<152x64xf32> to vector<64x64xf32>
    %cst_19 = arith.constant dense<0.000000e+00> : vector<2x64xf32>
    %49 = tpu.matmul %47, %48, %cst_19 {dimension_numbers = #tpu.dot_dimension_numbers<[1], [0], [0], [1], [0, 0, 1, 1], [], []>} : vector<2x64xf32>, vector<64x64xf32>, vector<2x64xf32> -> vector<2x64xf32>
    %c0_20 = arith.constant 0 : index
    %c0_21 = arith.constant 0 : index
    %50 = vector.load %arg2[%c0_20, %c0_21] : memref<2x64xf32, #tpu.memory_space<vmem>>, vector<2x64xf32>
    %51 = arith.addf %49, %50 : vector<2x64xf32>
    %cst_22 = arith.constant dense<0.000000e+00> : vector<2xf32>
    %52 = vector.multi_reduction <add>, %51, %cst_22 [1] : vector<2x64xf32> to vector<2xf32>
    %53 = vector.shape_cast %52 : vector<2xf32> to vector<2x1xf32>
    %cst_23 = arith.constant 6.400000e+01 : f32
    %54 = vector.broadcast %cst_23 : f32 to vector<2x1xf32>
    %55 = arith.divf %53, %54 : vector<2x1xf32>
    %56 = vector.broadcast %55 : vector<2x1xf32> to vector<2x64xf32>
    %57 = arith.subf %51, %56 : vector<2x64xf32>
    %58 = arith.mulf %57, %57 : vector<2x64xf32>
    %cst_24 = arith.constant dense<0.000000e+00> : vector<2xf32>
    %59 = vector.multi_reduction <add>, %58, %cst_24 [1] : vector<2x64xf32> to vector<2xf32>
    %60 = vector.shape_cast %59 : vector<2xf32> to vector<2x1xf32>
    %cst_25 = arith.constant 6.400000e+01 : f32
    %61 = vector.broadcast %cst_25 : f32 to vector<2x1xf32>
    %62 = arith.divf %60, %61 : vector<2x1xf32>
    %cst_26 = arith.constant 9.99999974E-6 : f32
    %63 = vector.broadcast %cst_26 : f32 to vector<2x1xf32>
    %64 = arith.addf %62, %63 : vector<2x1xf32>
    %65 = math.rsqrt %64 : vector<2x1xf32>
    %66 = vector.broadcast %65 : vector<2x1xf32> to vector<2x64xf32>
    %67 = arith.mulf %57, %66 : vector<2x64xf32>
    %68 = vector.extract_strided_slice %35 {offsets = [136, 0], sizes = [1, 64], strides = [1, 1]} : vector<152x64xf32> to vector<1x64xf32>
    %69 = vector.broadcast %68 : vector<1x64xf32> to vector<2x64xf32>
    %70 = arith.mulf %67, %69 : vector<2x64xf32>
    %71 = vector.extract_strided_slice %35 {offsets = [144, 0], sizes = [1, 64], strides = [1, 1]} : vector<152x64xf32> to vector<1x64xf32>
    %72 = vector.broadcast %71 : vector<1x64xf32> to vector<2x64xf32>
    %73 = arith.addf %70, %72 : vector<2x64xf32>
    %74 = tpu.concatenate %73, %49 in 1 : vector<2x64xf32>, vector<2x64xf32> -> vector<2x128xf32>
    %c0_27 = arith.constant 0 : index
    %c0_28 = arith.constant 0 : index
    %75 = vector.load %arg5[%c0_27, %c0_28] : memref<2x128xf32, #tpu.memory_space<vmem>>, vector<2x128xf32>
    tpu.vector_store %arg5[%c0_27, %c0_28], %74 {strides = array<i32>} : memref<2x128xf32, #tpu.memory_space<vmem>>, vector<2x128xf32>,
    return
  }
}

</mosaic_0001>

<llo_original>
// kernel: context_attention_block.1
$region0: #{context_attention_block.1}
  #allocation0 [shape = 'u32[]', space=smem, size = 0x4, offset = 0x4, fixed_abs, tag = 'smem constant byte address 0x4 - core index']
  #allocation1 [shape = 'u32[144,128]{1,0:T(1,128)}', space=vmem, size = 0x12000, scoped, tag = 'internal scratch']
  %s0 = inlined_call_operand.vmem [shape: f32[96,32], index: 0, kind: input, shape index: {}]
  %s1 = inlined_call_operand.vmem [shape: f32[8,8,8], index: 1, kind: input, shape index: {}]
  %s2 = inlined_call_operand.vmem [shape: f32[2,64], index: 2, kind: input, shape index: {}]
  %s3 = inlined_call_operand.vmem [shape: f32[96,32], index: 3, kind: input, shape index: {}]
  %s4 = inlined_call_operand.vmem [shape: f32[152,64], index: 4, kind: input, shape index: {}]
  %s5 = inlined_call_operand.vmem [shape: f32[2,128], index: 5, kind: output, shape index: {}]
  %s6 = sld [smem:[#allocation0]]
  $region30: #{context_attention_block.1} parent=0
    _
  %s8 = ssub.s32 1, %s6
  %s9 = scalar_select 0, %s8, %s6
  // Predicated region
  $region2: #{context_attention_block.1} parent=0 // pred_check
    _
  $region3: #{context_attention_block.1} parent=0 // pred_check_branch
    %11 = sbr.rel (0) target = $region5
  $region4: #{context_attention_block.1} parent=0 // pred_region
    _
  $region5: #{context_attention_block.1} parent=0 // pred_fallthru
    _
  // Predicated region
  $region6: #{context_attention_block.1} parent=0 // pred_check
    _
  $region7: #{context_attention_block.1} parent=0 // pred_check_branch
    %13 = sbr.rel (0) target = $region9
  $region8: #{context_attention_block.1} parent=0 // pred_region
    _
  $region9: #{context_attention_block.1} parent=0 // pred_fallthru
    _
  // Predicated region
  $region10: #{context_attention_block.1} parent=0 // pred_check
    _
  $region11: #{context_attention_block.1} parent=0 // pred_check_branch
    %15 = sbr.rel (0) target = $region13
  $region12: #{context_attention_block.1} parent=0 // pred_region
    _
  $region13: #{context_attention_block.1} parent=0 // pred_fallthru
    _
  // Predicated region
  $region14: #{context_attention_block.1} parent=0 // pred_check
    _
  $region15: #{context_attention_block.1} parent=0 // pred_check_branch
    %17 = sbr.rel (0) target = $region17
  $region16: #{context_attention_block.1} parent=0 // pred_region
    _
  $region17: #{context_attention_block.1} parent=0 // pred_fallthru
    _
  // Predicated region
  $region18: #{context_attention_block.1} parent=0 // pred_check
    _
  $region19: #{context_attention_block.1} parent=0 // pred_check_branch
    %19 = sbr.rel (0) target = $region21
  $region20: #{context_attention_block.1} parent=0 // pred_region
    _
  $region21: #{context_attention_block.1} parent=0 // pred_fallthru
    _
  %v20 = vld [vmem:[%s0] sm:$0xff]
  %v21 = vld [vmem:[%s0 + $0x8] sm:$0xff]
  %v22 = vld [vmem:[%s0 + $0x10] sm:$0xff]
  %v23 = vld [vmem:[%s0 + $0x18] sm:$0xff]
  %v24 = vld [vmem:[%s0 + $0x20] sm:$0xff]
  %v25 = vld [vmem:[%s0 + $0x28] sm:$0xff]
  %v26 = vld [vmem:[%s0 + $0x30] sm:$0xff]
  %v27 = vld [vmem:[%s0 + $0x38] sm:$0xff]
  %v28 = vld [vmem:[%s0 + $0x40] sm:$0xff]
  %v29 = vld [vmem:[%s0 + $0x48] sm:$0xff]
  %v30 = vld [vmem:[%s0 + $0x50] sm:$0xff]
  %v31 = vld [vmem:[%s0 + $0x58] sm:$0xff]
  %v32 = vld [vmem:[%s3] sm:$0xff]
  %v33 = vld [vmem:[%s3 + $0x8] sm:$0xff]
  %v34 = vld [vmem:[%s3 + $0x10] sm:$0xff]
  %v35 = vld [vmem:[%s3 + $0x18] sm:$0xff]
  %v36 = vld [vmem:[%s3 + $0x20] sm:$0xff]
  %v37 = vld [vmem:[%s3 + $0x28] sm:$0xff]
  %v38 = vld [vmem:[%s3 + $0x30] sm:$0xff]
  %v39 = vld [vmem:[%s3 + $0x38] sm:$0xff]
  %v40 = vld [vmem:[%s3 + $0x40] sm:$0xff]
  %v41 = vld [vmem:[%s3 + $0x48] sm:$0xff]
  %v42 = vld [vmem:[%s3 + $0x50] sm:$0xff]
  %v43 = vld [vmem:[%s3 + $0x58] sm:$0xff]
  %vm44 = vcmask 261120
  %v46 = vsel %vm44, %v20, 0
  %v49 = vsel %vm44, %v21, 0
  %v52 = vsel %vm44, %v22, 0
  %v55 = vsel %vm44, %v23, 0
  %57 = vmatprep.subr.mxu0 0.0
  %58 = vmatpush1.msra.mxu0 %v32
  %59 = vmatprep.subr.mxu0 0.0
  %60 = vmatpush1.msra.mxu0 %v33
  %61 = vmatprep.subr.mxu0 0.0
  %62 = vmatpush1.msra.mxu0 %v34
  %63 = vmatprep.subr.mxu0 0.0
  %64 = vmatpush1.msra.mxu0 %v35
  %65 = vmatprep.subr.mxu0 0.0
  %66 = vmatpush1.msra.mxu0 0.0
  %67 = vmatprep.subr.mxu0 0.0
  %68 = vmatpush1.msra.mxu0 0.0
  %69 = vmatprep.subr.mxu0 0.0
  %70 = vmatpush1.msra.mxu0 0.0
  %71 = vmatprep.subr.mxu0 0.0
  %72 = vmatpush1.msra.mxu0 0.0
  %73 = vmatprep.subr.mxu0 0.0
  %74 = vmatpush1.msra.mxu0 0.0
  %75 = vmatprep.subr.mxu0 0.0
  %76 = vmatpush1.msra.mxu0 0.0
  %77 = vmatprep.subr.mxu0 0.0
  %78 = vmatpush1.msra.mxu0 0.0
  %79 = vmatprep.subr.mxu0 0.0
  %80 = vmatpush1.msra.mxu0 0.0
  %81 = vmatprep.subr.mxu0 0.0
  %82 = vmatpush1.msra.mxu0 0.0
  %83 = vmatprep.subr.mxu0 0.0
  %84 = vmatpush1.msra.mxu0 0.0
  %85 = vmatprep.subr.mxu0 0.0
  %86 = vmatpush1.msra.mxu0 0.0
  %87 = vmatprep.subr.mxu0 0.0
  %88 = vmatpush1.msra.mxu0 0.0
  %89 = vmatprep.subr.mxu0 0.0
  %90 = vmatpush1.msra.mxu0 0.0
  %91 = vmatprep.subr.mxu0 0.0
  %92 = vmatpush1.msra.mxu0 0.0
  %93 = vmatprep.subr.mxu0 0.0
  %94 = vmatpush1.msra.mxu0 0.0
  %95 = vmatprep.subr.mxu0 0.0
  %96 = vmatpush1.msra.mxu0 0.0
  %97 = vmatprep.subr.mxu0 0.0
  %98 = vmatpush1.msra.mxu0 0.0
  %99 = vmatprep.subr.mxu0 0.0
  %100 = vmatpush1.msra.mxu0 0.0
  %101 = vmatprep.subr.mxu0 0.0
  %102 = vmatpush1.msra.mxu0 0.0
  %103 = vmatprep.subr.mxu0 0.0
  %104 = vmatpush1.msra.mxu0 0.0
  %105 = vmatprep.subr.mxu0 0.0
  %106 = vmatpush1.msra.mxu0 0.0
  %107 = vmatprep.subr.mxu0 0.0
  %108 = vmatpush1.msra.mxu0 0.0
  %109 = vmatprep.subr.mxu0 0.0
  %110 = vmatpush1.msra.mxu0 0.0
  %111 = vmatprep.subr.mxu0 0.0
  %112 = vmatpush1.msra.mxu0 0.0
  %113 = vmatprep.subr.mxu0 0.0
  %114 = vmatpush1.msra.mxu0 0.0
  %115 = vmatprep.subr.mxu0 0.0
  %116 = vmatpush1.msra.mxu0 0.0
  %117 = vmatprep.subr.mxu0 0.0
  %118 = vmatpush1.msra.mxu0 0.0
  %119 = vmatprep.subr.mxu0 0.0
  %120 = vmatpush1.msra.mxu0 0.0
  %121 = vmatprep.mubr.f32.mxu0 0.0
  %122 = vmatmul.mubr.f32.gmra.mrb[0].mxu0 %v46
  %v123 = vpop.f32.mrb[0].mxu0
  %v124 = vadd.f32 0.0, %v123
  %v125 = vpop.f32.mrb[0].mxu0
  %126 = vmatprep.mubr.f32.mxu0 0.0
  %127 = vmatmul.mubr.f32.gmra.mrb[0].mxu0 %v49
  %v128 = vpop.f32.mrb[0].mxu0
  %v129 = vadd.f32 0.0, %v128
  %v130 = vpop.f32.mrb[0].mxu0
  %131 = vmatprep.mubr.f32.mxu0 0.0
  %132 = vmatmul.mubr.f32.gmra.mrb[0].mxu0 %v52
  %v133 = vpop.f32.mrb[0].mxu0
  %v134 = vadd.f32 0.0, %v133
  %v135 = vpop.f32.mrb[0].mxu0
  %136 = vmatprep.mubr.f32.mxu0 0.0
  %137 = vmatmul.mubr.f32.gmra.mrb[0].mxu0 %v55
  %v138 = vpop.f32.mrb[0].mxu0
  %v139 = vadd.f32 0.0, %v138
  %v140 = vpop.f32.mrb[0].mxu0
  %141 = vdwg.mxu0
  %v143 = vsel %vm44, %v24, 0
  %v146 = vsel %vm44, %v25, 0
  %v149 = vsel %vm44, %v26, 0
  %v152 = vsel %vm44, %v27, 0
  %154 = vmatprep.subr.mxu0 0.0
  %155 = vmatpush1.msra.mxu0 %v36
  %156 = vmatprep.subr.mxu0 0.0
  %157 = vmatpush1.msra.mxu0 %v37
  %158 = vmatprep.subr.mxu0 0.0
  %159 = vmatpush1.msra.mxu0 %v38
  %160 = vmatprep.subr.mxu0 0.0
  %161 = vmatpush1.msra.mxu0 %v39
  %162 = vmatprep.subr.mxu0 0.0
  %163 = vmatpush1.msra.mxu0 0.0
  %164 = vmatprep.subr.mxu0 0.0
  %165 = vmatpush1.msra.mxu0 0.0
  %166 = vmatprep.subr.mxu0 0.0
  %167 = vmatpush1.msra.mxu0 0.0
  %168 = vmatprep.subr.mxu0 0.0
  %169 = vmatpush1.msra.mxu0 0.0
  %170 = vmatprep.subr.mxu0 0.0
  %171 = vmatpush1.msra.mxu0 0.0
  %172 = vmatprep.subr.mxu0 0.0
  %173 = vmatpush1.msra.mxu0 0.0
  %174 = vmatprep.subr.mxu0 0.0
  %175 = vmatpush1.msra.mxu0 0.0
  %176 = vmatprep.subr.mxu0 0.0
  %177 = vmatpush1.msra.mxu0 0.0
  %178 = vmatprep.subr.mxu0 0.0
  %179 = vmatpush1.msra.mxu0 0.0
  %180 = vmatprep.subr.mxu0 0.0
  %181 = vmatpush1.msra.mxu0 0.0
  %182 = vmatprep.subr.mxu0 0.0
  %183 = vmatpush1.msra.mxu0 0.0
  %184 = vmatprep.subr.mxu0 0.0
  %185 = vmatpush1.msra.mxu0 0.0
  %186 = vmatprep.subr.mxu0 0.0
  %187 = vmatpush1.msra.mxu0 0.0
  %188 = vmatprep.subr.mxu0 0.0
  %189 = vmatpush1.msra.mxu0 0.0
  %190 = vmatprep.subr.mxu0 0.0
  %191 = vmatpush1.msra.mxu0 0.0
  %192 = vmatprep.subr.mxu0 0.0
  %193 = vmatpush1.msra.mxu0 0.0
  %194 = vmatprep.subr.mxu0 0.0
  %195 = vmatpush1.msra.mxu0 0.0
  %196 = vmatprep.subr.mxu0 0.0
  %197 = vmatpush1.msra.mxu0 0.0
  %198 = vmatprep.subr.mxu0 0.0
  %199 = vmatpush1.msra.mxu0 0.0
  %200 = vmatprep.subr.mxu0 0.0
  %201 = vmatpush1.msra.mxu0 0.0
  %202 = vmatprep.subr.mxu0 0.0
  %203 = vmatpush1.msra.mxu0 0.0
  %204 = vmatprep.subr.mxu0 0.0
  %205 = vmatpush1.msra.mxu0 0.0
  %206 = vmatprep.subr.mxu0 0.0
  %207 = vmatpush1.msra.mxu0 0.0
  %208 = vmatprep.subr.mxu0 0.0
  %209 = vmatpush1.msra.mxu0 0.0
  %210 = vmatprep.subr.mxu0 0.0
  %211 = vmatpush1.msra.mxu0 0.0
  %212 = vmatprep.subr.mxu0 0.0
  %213 = vmatpush1.msra.mxu0 0.0
  %214 = vmatprep.subr.mxu0 0.0
  %215 = vmatpush1.msra.mxu0 0.0
  %216 = vmatprep.subr.mxu0 0.0
  %217 = vmatpush1.msra.mxu0 0.0
  %218 = vmatprep.mubr.f32.mxu0 0.0
  %219 = vmatmul.mubr.f32.gmra.mrb[0].mxu0 %v143
  %v220 = vpop.f32.mrb[0].mxu0
  %v221 = vadd.f32 0.0, %v220
  %v222 = vpop.f32.mrb[0].mxu0
  %223 = vmatprep.mubr.f32.mxu0 0.0
  %224 = vmatmul.mubr.f32.gmra.mrb[0].mxu0 %v146
  %v225 = vpop.f32.mrb[0].mxu0
  %v226 = vadd.f32 0.0, %v225
  %v227 = vpop.f32.mrb[0].mxu0
  %228 = vmatprep.mubr.f32.mxu0 0.0
  %229 = vmatmul.mubr.f32.gmra.mrb[0].mxu0 %v149
  %v230 = vpop.f32.mrb[0].mxu0
  %v231 = vadd.f32 0.0, %v230
  %v232 = vpop.f32.mrb[0].mxu0
  %233 = vmatprep.mubr.f32.mxu0 0.0
  %234 = vmatmul.mubr.f32.gmra.mrb[0].mxu0 %v152
  %v235 = vpop.f32.mrb[0].mxu0
  %v236 = vadd.f32 0.0, %v235
  %v237 = vpop.f32.mrb[0].mxu0
  %238 = vdwg.mxu0
  %v240 = vsel %vm44, %v28, 0
  %v243 = vsel %vm44, %v29, 0
  %v246 = vsel %vm44, %v30, 0
  %v249 = vsel %vm44, %v31, 0
  %251 = vmatprep.subr.mxu0 0.0
  %252 = vmatpush1.msra.mxu0 %v40
  %253 = vmatprep.subr.mxu0 0.0
  %254 = vmatpush1.msra.mxu0 %v41
  %255 = vmatprep.subr.mxu0 0.0
  %256 = vmatpush1.msra.mxu0 %v42
  %257 = vmatprep.subr.mxu0 0.0
  %258 = vmatpush1.msra.mxu0 %v43
  %259 = vmatprep.subr.mxu0 0.0
  %260 = vmatpush1.msra.mxu0 0.0
  %261 = vmatprep.subr.mxu0 0.0
  %262 = vmatpush1.msra.mxu0 0.0
  %263 = vmatprep.subr.mxu0 0.0
  %264 = vmatpush1.msra.mxu0 0.0
  %265 = vmatprep.subr.mxu0 0.0
  %266 = vmatpush1.msra.mxu0 0.0
  %267 = vmatprep.subr.mxu0 0.0
  %268 = vmatpush1.msra.mxu0 0.0
  %269 = vmatprep.subr.mxu0 0.0
  %270 = vmatpush1.msra.mxu0 0.0
  %271 = vmatprep.subr.mxu0 0.0
  %272 = vmatpush1.msra.mxu0 0.0
  %273 = vmatprep.subr.mxu0 0.0
  %274 = vmatpush1.msra.mxu0 0.0
  %275 = vmatprep.subr.mxu0 0.0
  %276 = vmatpush1.msra.mxu0 0.0
  %277 = vmatprep.subr.mxu0 0.0
  %278 = vmatpush1.msra.mxu0 0.0
  %279 = vmatprep.subr.mxu0 0.0
  %280 = vmatpush1.msra.mxu0 0.0
  %281 = vmatprep.subr.mxu0 0.0
  %282 = vmatpush1.msra.mxu0 0.0
  %283 = vmatprep.subr.mxu0 0.0
  %284 = vmatpush1.msra.mxu0 0.0
  %285 = vmatprep.subr.mxu0 0.0
  %286 = vmatpush1.msra.mxu0 0.0
  %287 = vmatprep.subr.mxu0 0.0
  %288 = vmatpush1.msra.mxu0 0.0
  %289 = vmatprep.subr.mxu0 0.0
  %290 = vmatpush1.msra.mxu0 0.0
  %291 = vmatprep.subr.mxu0 0.0
  %292 = vmatpush1.msra.mxu0 0.0
  %293 = vmatprep.subr.mxu0 0.0
  %294 = vmatpush1.msra.mxu0 0.0
  %295 = vmatprep.subr.mxu0 0.0
  %296 = vmatpush1.msra.mxu0 0.0
  %297 = vmatprep.subr.mxu0 0.0
  %298 = vmatpush1.msra.mxu0 0.0
  %299 = vmatprep.subr.mxu0 0.0
  %300 = vmatpush1.msra.mxu0 0.0
  %301 = vmatprep.subr.mxu0 0.0
  %302 = vmatpush1.msra.mxu0 0.0
  %303 = vmatprep.subr.mxu0 0.0
  %304 = vmatpush1.msra.mxu0 0.0
  %305 = vmatprep.subr.mxu0 0.0
  %306 = vmatpush1.msra.mxu0 0.0
  %307 = vmatprep.subr.mxu0 0.0
  %308 = vmatpush1.msra.mxu0 0.0
  %309 = vmatprep.subr.mxu0 0.0
  %310 = vmatpush1.msra.mxu0 0.0
  %311 = vmatprep.subr.mxu0 0.0
  %312 = vmatpush1.msra.mxu0 0.0
  %313 = vmatprep.subr.mxu0 0.0
  %314 = vmatpush1.msra.mxu0 0.0
  %315 = vmatprep.mubr.f32.mxu0 0.0
  %316 = vmatmul.mubr.f32.gmra.mrb[0].mxu0 %v240
  %v317 = vpop.f32.mrb[0].mxu0
  %v318 = vadd.f32 0.0, %v317
  %v319 = vpop.f32.mrb[0].mxu0
  %320 = vmatprep.mubr.f32.mxu0 0.0
  %321 = vmatmul.mubr.f32.gmra.mrb[0].mxu0 %v243
  %v322 = vpop.f32.mrb[0].mxu0
  %v323 = vadd.f32 0.0, %v322
  %v324 = vpop.f32.mrb[0].mxu0
  %325 = vmatprep.mubr.f32.mxu0 0.0
  %326 = vmatmul.mubr.f32.gmra.mrb[0].mxu0 %v246
  %v327 = vpop.f32.mrb[0].mxu0
  %v328 = vadd.f32 0.0, %v327
  %v329 = vpop.f32.mrb[0].mxu0
  %330 = vmatprep.mubr.f32.mxu0 0.0
  %331 = vmatmul.mubr.f32.gmra.mrb[0].mxu0 %v249
  %v332 = vpop.f32.mrb[0].mxu0
  %v333 = vadd.f32 0.0, %v332
  %v334 = vpop.f32.mrb[0].mxu0
  %335 = vdwg.mxu0
  %v336 = vld [vmem:[%s1] sm:$0xff]
  %v337 = vld [vmem:[%s1 + $0x8] sm:$0xff]
  %v338 = vld [vmem:[%s1 + $0x10] sm:$0xff]
  %v339 = vld [vmem:[%s1 + $0x18] sm:$0xff]
  %v340 = vld [vmem:[%s1 + $0x20] sm:$0xff]
  %v341 = vld [vmem:[%s1 + $0x28] sm:$0xff]
  %v342 = vld [vmem:[%s1 + $0x30] sm:$0xff]
  %v343 = vld [vmem:[%s1 + $0x38] sm:$0xff]
  %v345 = vsel %vm44, %v124, 0
  %v348 = vsel %vm44, %v221, 0
  %350 = vmatprep.subr.mxu0 0.0
  %351 = vmatpush1.xpose.msra.mxu0 %v348
  %352 = vmatprep.subr.mxu0 0.0
  %353 = vmatpush1.xpose.msra.mxu0 0.0
  %354 = vmatprep.subr.mxu0 0.0
  %355 = vmatpush1.xpose.msra.mxu0 0.0
  %356 = vmatprep.subr.mxu0 0.0
  %357 = vmatpush1.xpose.msra.mxu0 0.0
  %358 = vmatprep.subr.mxu0 0.0
  %359 = vmatpush1.xpose.msra.mxu0 0.0
  %360 = vmatprep.subr.mxu0 0.0
  %361 = vmatpush1.xpose.msra.mxu0 0.0
  %362 = vmatprep.subr.mxu0 0.0
  %363 = vmatpush1.xpose.msra.mxu0 0.0
  %364 = vmatprep.subr.mxu0 0.0
  %365 = vmatpush1.xpose.msra.mxu0 0.0
  %366 = vmatprep.subr.mxu0 0.0
  %367 = vmatpush1.xpose.msra.mxu0 0.0
  %368 = vmatprep.subr.mxu0 0.0
  %369 = vmatpush1.xpose.msra.mxu0 0.0
  %370 = vmatprep.subr.mxu0 0.0
  %371 = vmatpush1.xpose.msra.mxu0 0.0
  %372 = vmatprep.subr.mxu0 0.0
  %373 = vmatpush1.xpose.msra.mxu0 0.0
  %374 = vmatprep.subr.mxu0 0.0
  %375 = vmatpush1.xpose.msra.mxu0 0.0
  %376 = vmatprep.subr.mxu0 0.0
  %377 = vmatpush1.xpose.msra.mxu0 0.0
  %378 = vmatprep.subr.mxu0 0.0
  %379 = vmatpush1.xpose.msra.mxu0 0.0
  %380 = vmatprep.subr.mxu0 0.0
  %381 = vmatpush1.xpose.msra.mxu0 0.0
  %382 = vmatprep.subr.mxu0 0.0
  %383 = vmatpush1.xpose.msra.mxu0 0.0
  %384 = vmatprep.subr.mxu0 0.0
  %385 = vmatpush1.xpose.msra.mxu0 0.0
  %386 = vmatprep.subr.mxu0 0.0
  %387 = vmatpush1.xpose.msra.mxu0 0.0
  %388 = vmatprep.subr.mxu0 0.0
  %389 = vmatpush1.xpose.msra.mxu0 0.0
  %390 = vmatprep.subr.mxu0 0.0
  %391 = vmatpush1.xpose.msra.mxu0 0.0
  %392 = vmatprep.subr.mxu0 0.0
  %393 = vmatpush1.xpose.msra.mxu0 0.0
  %394 = vmatprep.subr.mxu0 0.0
  %395 = vmatpush1.xpose.msra.mxu0 0.0
  %396 = vmatprep.subr.mxu0 0.0
  %397 = vmatpush1.xpose.msra.mxu0 0.0
  %398 = vmatprep.subr.mxu0 0.0
  %399 = vmatpush1.xpose.msra.mxu0 0.0
  %400 = vmatprep.subr.mxu0 0.0
  %401 = vmatpush1.xpose.msra.mxu0 0.0
  %402 = vmatprep.subr.mxu0 0.0
  %403 = vmatpush1.xpose.msra.mxu0 0.0
  %404 = vmatprep.subr.mxu0 0.0
  %405 = vmatpush1.xpose.msra.mxu0 0.0
  %406 = vmatprep.subr.mxu0 0.0
  %407 = vmatpush1.xpose.msra.mxu0 0.0
  %408 = vmatprep.subr.mxu0 0.0
  %409 = vmatpush1.xpose.msra.mxu0 0.0
  %410 = vmatprep.subr.mxu0 0.0
  %411 = vmatpush1.xpose.msra.mxu0 0.0
  %412 = vmatprep.subr.mxu0 0.0
  %413 = vmatpush1.xpose.msra.mxu0 0.0
  %414 = vmatprep.mubr.f32.mxu0 0.0
  %415 = vmatmul.mubr.f32.gmra.mrb[0].mxu0 %v345
  %v416 = vpop.f32.mrb[0].mxu0
  %v417 = vadd.f32 0.0, %v416
  %v418 = vpop.f32.mrb[0].mxu0
  %419 = vdwg.mxu0
  %v421 = vsel %vm44, %v129, 0
  %v424 = vsel %vm44, %v226, 0
  %426 = vmatprep.subr.mxu0 0.0
  %427 = vmatpush1.xpose.msra.mxu0 %v424
  %428 = vmatprep.subr.mxu0 0.0
  %429 = vmatpush1.xpose.msra.mxu0 0.0
  %430 = vmatprep.subr.mxu0 0.0
  %431 = vmatpush1.xpose.msra.mxu0 0.0
  %432 = vmatprep.subr.mxu0 0.0
  %433 = vmatpush1.xpose.msra.mxu0 0.0
  %434 = vmatprep.subr.mxu0 0.0
  %435 = vmatpush1.xpose.msra.mxu0 0.0
  %436 = vmatprep.subr.mxu0 0.0
  %437 = vmatpush1.xpose.msra.mxu0 0.0
  %438 = vmatprep.subr.mxu0 0.0
  %439 = vmatpush1.xpose.msra.mxu0 0.0
  %440 = vmatprep.subr.mxu0 0.0
  %441 = vmatpush1.xpose.msra.mxu0 0.0
  %442 = vmatprep.subr.mxu0 0.0
  %443 = vmatpush1.xpose.msra.mxu0 0.0
  %444 = vmatprep.subr.mxu0 0.0
  %445 = vmatpush1.xpose.msra.mxu0 0.0
  %446 = vmatprep.subr.mxu0 0.0
  %447 = vmatpush1.xpose.msra.mxu0 0.0
  %448 = vmatprep.subr.mxu0 0.0
  %449 = vmatpush1.xpose.msra.mxu0 0.0
  %450 = vmatprep.subr.mxu0 0.0
  %451 = vmatpush1.xpose.msra.mxu0 0.0
  %452 = vmatprep.subr.mxu0 0.0
  %453 = vmatpush1.xpose.msra.mxu0 0.0
  %454 = vmatprep.subr.mxu0 0.0
  %455 = vmatpush1.xpose.msra.mxu0 0.0
  %456 = vmatprep.subr.mxu0 0.0
  %457 = vmatpush1.xpose.msra.mxu0 0.0
  %458 = vmatprep.subr.mxu0 0.0
  %459 = vmatpush1.xpose.msra.mxu0 0.0
  %460 = vmatprep.subr.mxu0 0.0
  %461 = vmatpush1.xpose.msra.mxu0 0.0
  %462 = vmatprep.subr.mxu0 0.0
  %463 = vmatpush1.xpose.msra.mxu0 0.0
  %464 = vmatprep.subr.mxu0 0.0
  %465 = vmatpush1.xpose.msra.mxu0 0.0
  %466 = vmatprep.subr.mxu0 0.0
  %467 = vmatpush1.xpose.msra.mxu0 0.0
  %468 = vmatprep.subr.mxu0 0.0
  %469 = vmatpush1.xpose.msra.mxu0 0.0
  %470 = vmatprep.subr.mxu0 0.0
  %471 = vmatpush1.xpose.msra.mxu0 0.0
  %472 = vmatprep.subr.mxu0 0.0
  %473 = vmatpush1.xpose.msra.mxu0 0.0
  %474 = vmatprep.subr.mxu0 0.0
  %475 = vmatpush1.xpose.msra.mxu0 0.0
  %476 = vmatprep.subr.mxu0 0.0
  %477 = vmatpush1.xpose.msra.mxu0 0.0
  %478 = vmatprep.subr.mxu0 0.0
  %479 = vmatpush1.xpose.msra.mxu0 0.0
  %480 = vmatprep.subr.mxu0 0.0
  %481 = vmatpush1.xpose.msra.mxu0 0.0
  %482 = vmatprep.subr.mxu0 0.0
  %483 = vmatpush1.xpose.msra.mxu0 0.0
  %484 = vmatprep.subr.mxu0 0.0
  %485 = vmatpush1.xpose.msra.mxu0 0.0
  %486 = vmatprep.subr.mxu0 0.0
  %487 = vmatpush1.xpose.msra.mxu0 0.0
  %488 = vmatprep.subr.mxu0 0.0
  %489 = vmatpush1.xpose.msra.mxu0 0.0
  %490 = vmatprep.mubr.f32.mxu0 0.0
  %491 = vmatmul.mubr.f32.gmra.mrb[0].mxu0 %v421
  %v492 = vpop.f32.mrb[0].mxu0
  %v493 = vadd.f32 0.0, %v492
  %v494 = vpop.f32.mrb[0].mxu0
  %495 = vdwg.mxu0
  %v497 = vsel %vm44, %v134, 0
  %v500 = vsel %vm44, %v231, 0
  %502 = vmatprep.subr.mxu0 0.0
  %503 = vmatpush1.xpose.msra.mxu0 %v500
  %504 = vmatprep.subr.mxu0 0.0
  %505 = vmatpush1.xpose.msra.mxu0 0.0
  %506 = vmatprep.subr.mxu0 0.0
  %507 = vmatpush1.xpose.msra.mxu0 0.0
  %508 = vmatprep.subr.mxu0 0.0
  %509 = vmatpush1.xpose.msra.mxu0 0.0
  %510 = vmatprep.subr.mxu0 0.0
  %511 = vmatpush1.xpose.msra.mxu0 0.0
  %512 = vmatprep.subr.mxu0 0.0
  %513 = vmatpush1.xpose.msra.mxu0 0.0
  %514 = vmatprep.subr.mxu0 0.0
  %515 = vmatpush1.xpose.msra.mxu0 0.0
  %516 = vmatprep.subr.mxu0 0.0
  %517 = vmatpush1.xpose.msra.mxu0 0.0
  %518 = vmatprep.subr.mxu0 0.0
  %519 = vmatpush1.xpose.msra.mxu0 0.0
  %520 = vmatprep.subr.mxu0 0.0
  %521 = vmatpush1.xpose.msra.mxu0 0.0
  %522 = vmatprep.subr.mxu0 0.0
  %523 = vmatpush1.xpose.msra.mxu0 0.0
  %524 = vmatprep.subr.mxu0 0.0
  %525 = vmatpush1.xpose.msra.mxu0 0.0
  %526 = vmatprep.subr.mxu0 0.0
  %527 = vmatpush1.xpose.msra.mxu0 0.0
  %528 = vmatprep.subr.mxu0 0.0
  %529 = vmatpush1.xpose.msra.mxu0 0.0
  %530 = vmatprep.subr.mxu0 0.0
  %531 = vmatpush1.xpose.msra.mxu0 0.0
  %532 = vmatprep.subr.mxu0 0.0
  %533 = vmatpush1.xpose.msra.mxu0 0.0
  %534 = vmatprep.subr.mxu0 0.0
  %535 = vmatpush1.xpose.msra.mxu0 0.0
  %536 = vmatprep.subr.mxu0 0.0
  %537 = vmatpush1.xpose.msra.mxu0 0.0
  %538 = vmatprep.subr.mxu0 0.0
  %539 = vmatpush1.xpose.msra.mxu0 0.0
  %540 = vmatprep.subr.mxu0 0.0
  %541 = vmatpush1.xpose.msra.mxu0 0.0
  %542 = vmatprep.subr.mxu0 0.0
  %543 = vmatpush1.xpose.msra.mxu0 0.0
  %544 = vmatprep.subr.mxu0 0.0
  %545 = vmatpush1.xpose.msra.mxu0 0.0
  %546 = vmatprep.subr.mxu0 0.0
  %547 = vmatpush1.xpose.msra.mxu0 0.0
  %548 = vmatprep.subr.mxu0 0.0
  %549 = vmatpush1.xpose.msra.mxu0 0.0
  %550 = vmatprep.subr.mxu0 0.0
  %551 = vmatpush1.xpose.msra.mxu0 0.0
  %552 = vmatprep.subr.mxu0 0.0
  %553 = vmatpush1.xpose.msra.mxu0 0.0
  %554 = vmatprep.subr.mxu0 0.0
  %555 = vmatpush1.xpose.msra.mxu0 0.0
  %556 = vmatprep.subr.mxu0 0.0
  %557 = vmatpush1.xpose.msra.mxu0 0.0
  %558 = vmatprep.subr.mxu0 0.0
  %559 = vmatpush1.xpose.msra.mxu0 0.0
  %560 = vmatprep.subr.mxu0 0.0
  %561 = vmatpush1.xpose.msra.mxu0 0.0
  %562 = vmatprep.subr.mxu0 0.0
  %563 = vmatpush1.xpose.msra.mxu0 0.0
  %564 = vmatprep.subr.mxu0 0.0
  %565 = vmatpush1.xpose.msra.mxu0 0.0
  %566 = vmatprep.mubr.f32.mxu0 0.0
  %567 = vmatmul.mubr.f32.gmra.mrb[0].mxu0 %v497
  %v568 = vpop.f32.mrb[0].mxu0
  %v569 = vadd.f32 0.0, %v568
  %v570 = vpop.f32.mrb[0].mxu0
  %571 = vdwg.mxu0
  %v573 = vsel %vm44, %v139, 0
  %v576 = vsel %vm44, %v236, 0
  %578 = vmatprep.subr.mxu0 0.0
  %579 = vmatpush1.xpose.msra.mxu0 %v576
  %580 = vmatprep.subr.mxu0 0.0
  %581 = vmatpush1.xpose.msra.mxu0 0.0
  %582 = vmatprep.subr.mxu0 0.0
  %583 = vmatpush1.xpose.msra.mxu0 0.0
  %584 = vmatprep.subr.mxu0 0.0
  %585 = vmatpush1.xpose.msra.mxu0 0.0
  %586 = vmatprep.subr.mxu0 0.0
  %587 = vmatpush1.xpose.msra.mxu0 0.0
  %588 = vmatprep.subr.mxu0 0.0
  %589 = vmatpush1.xpose.msra.mxu0 0.0
  %590 = vmatprep.subr.mxu0 0.0
  %591 = vmatpush1.xpose.msra.mxu0 0.0
  %592 = vmatprep.subr.mxu0 0.0
  %593 = vmatpush1.xpose.msra.mxu0 0.0
  %594 = vmatprep.subr.mxu0 0.0
  %595 = vmatpush1.xpose.msra.mxu0 0.0
  %596 = vmatprep.subr.mxu0 0.0
  %597 = vmatpush1.xpose.msra.mxu0 0.0
  %598 = vmatprep.subr.mxu0 0.0
  %599 = vmatpush1.xpose.msra.mxu0 0.0
  %600 = vmatprep.subr.mxu0 0.0
  %601 = vmatpush1.xpose.msra.mxu0 0.0
  %602 = vmatprep.subr.mxu0 0.0
  %603 = vmatpush1.xpose.msra.mxu0 0.0
  %604 = vmatprep.subr.mxu0 0.0
  %605 = vmatpush1.xpose.msra.mxu0 0.0
  %606 = vmatprep.subr.mxu0 0.0
  %607 = vmatpush1.xpose.msra.mxu0 0.0
  %608 = vmatprep.subr.mxu0 0.0
  %609 = vmatpush1.xpose.msra.mxu0 0.0
  %610 = vmatprep.subr.mxu0 0.0
  %611 = vmatpush1.xpose.msra.mxu0 0.0
  %612 = vmatprep.subr.mxu0 0.0
  %613 = vmatpush1.xpose.msra.mxu0 0.0
  %614 = vmatprep.subr.mxu0 0.0
  %615 = vmatpush1.xpose.msra.mxu0 0.0
  %616 = vmatprep.subr.mxu0 0.0
  %617 = vmatpush1.xpose.msra.mxu0 0.0
  %618 = vmatprep.subr.mxu0 0.0
  %619 = vmatpush1.xpose.msra.mxu0 0.0
  %620 = vmatprep.subr.mxu0 0.0
  %621 = vmatpush1.xpose.msra.mxu0 0.0
  %622 = vmatprep.subr.mxu0 0.0
  %623 = vmatpush1.xpose.msra.mxu0 0.0
  %624 = vmatprep.subr.mxu0 0.0
  %625 = vmatpush1.xpose.msra.mxu0 0.0
  %626 = vmatprep.subr.mxu0 0.0
  %627 = vmatpush1.xpose.msra.mxu0 0.0
  %628 = vmatprep.subr.mxu0 0.0
  %629 = vmatpush1.xpose.msra.mxu0 0.0
  %630 = vmatprep.subr.mxu0 0.0
  %631 = vmatpush1.xpose.msra.mxu0 0.0
  %632 = vmatprep.subr.mxu0 0.0
  %633 = vmatpush1.xpose.msra.mxu0 0.0
  %634 = vmatprep.subr.mxu0 0.0
  %635 = vmatpush1.xpose.msra.mxu0 0.0
  %636 = vmatprep.subr.mxu0 0.0
  %637 = vmatpush1.xpose.msra.mxu0 0.0
  %638 = vmatprep.subr.mxu0 0.0
  %639 = vmatpush1.xpose.msra.mxu0 0.0
  %640 = vmatprep.subr.mxu0 0.0
  %641 = vmatpush1.xpose.msra.mxu0 0.0
  %642 = vmatprep.mubr.f32.mxu0 0.0
  %643 = vmatmul.mubr.f32.gmra.mrb[0].mxu0 %v573
  %v644 = vpop.f32.mrb[0].mxu0
  %v645 = vadd.f32 0.0, %v644
  %v646 = vpop.f32.mrb[0].mxu0
  %647 = vdwg.mxu0
  %v648 = vmul.f32 %v417, %v336
  %v649 = vmul.f32 %v493, %v337
  %v650 = vmul.f32 %v569, %v338
  %v651 = vmul.f32 %v645, %v339
  %v652 = vadd.f32 %v648, %v340
  %v653 = vadd.f32 %v649, %v341
  %v654 = vadd.f32 %v650, %v342
  %v655 = vadd.f32 %v651, %v343
  %vm656 = vcmask 64512
  %v657 = vsel %vm656, %v652, 0.0
  %v658 = vrot.slane %v657, 4
  %v659 = vadd.f32 %v657, %v658
  %v660 = vrot.slane %v659, 2
  %v661 = vadd.f32 %v659, %v660
  %v662 = vrot.slane %v661, 1
  %v663 = vadd.f32 %v661, %v662
  %v664 = vsel %vm656, %v653, 0.0
  %v665 = vrot.slane %v664, 4
  %v666 = vadd.f32 %v664, %v665
  %v667 = vrot.slane %v666, 2
  %v668 = vadd.f32 %v666, %v667
  %v669 = vrot.slane %v668, 1
  %v670 = vadd.f32 %v668, %v669
  %v671 = vsel %vm656, %v654, 0.0
  %v672 = vrot.slane %v671, 4
  %v673 = vadd.f32 %v671, %v672
  %v674 = vrot.slane %v673, 2
  %v675 = vadd.f32 %v673, %v674
  %v676 = vrot.slane %v675, 1
  %v677 = vadd.f32 %v675, %v676
  %v678 = vsel %vm656, %v655, 0.0
  %v679 = vrot.slane %v678, 4
  %v680 = vadd.f32 %v678, %v679
  %v681 = vrot.slane %v680, 2
  %v682 = vadd.f32 %v680, %v681
  %v683 = vrot.slane %v682, 1
  %v684 = vadd.f32 %v682, %v683
  %v685 = vrcp.pop 8.0
  %v686 = vmul.f32 %v663, %v685
  %v687 = vmul.f32 %v670, %v685
  %v688 = vmul.f32 %v677, %v685
  %v689 = vmul.f32 %v684, %v685
  %v690 = vsel %vm656, %v686, -inf
  %691 = vmax.xlane.f32.xlu0 %v690
  %v692 = vpop.xlane.xlu0 %691
  %v693 = vsel %vm656, %v687, -inf
  %694 = vmax.xlane.f32.xlu0 %v693
  %v695 = vpop.xlane.xlu0 %694
  %v696 = vsel %vm656, %v688, -inf
  %697 = vmax.xlane.f32.xlu0 %v696
  %v698 = vpop.xlane.xlu0 %697
  %v699 = vsel %vm656, %v689, -inf
  %700 = vmax.xlane.f32.xlu0 %v699
  %v701 = vpop.xlane.xlu0 %700
  %v702 = vsub.f32 %v686, %v692
  %v703 = vsub.f32 %v687, %v695
  %v704 = vsub.f32 %v688, %v698
  %v705 = vsub.f32 %v689, %v701
  %v706 = vmul.f32 %v702, 1.442695
  %v707 = vpow.pop %v706
  %v708 = vmul.f32 %v703, 1.442695
  %v709 = vpow.pop %v708
  %v710 = vmul.f32 %v704, 1.442695
  %v711 = vpow.pop %v710
  %v712 = vmul.f32 %v705, 1.442695
  %v713 = vpow.pop %v712
  %v714 = vsel %vm656, %v707, 0.0
  %715 = vadd.xlane.f32.xlu0 %v714
  %v716 = vpop.xlane.xlu0 %715
  %v717 = vsel %vm656, %v709, 0.0
  %718 = vadd.xlane.f32.xlu0 %v717
  %v719 = vpop.xlane.xlu0 %718
  %v720 = vsel %vm656, %v711, 0.0
  %721 = vadd.xlane.f32.xlu0 %v720
  %v722 = vpop.xlane.xlu0 %721
  %v723 = vsel %vm656, %v713, 0.0
  %724 = vadd.xlane.f32.xlu0 %v723
  %v725 = vpop.xlane.xlu0 %724
  %v726 = vrcp.pop %v716
  %v727 = vmul.f32 %v707, %v726
  %v728 = vrcp.pop %v719
  %v729 = vmul.f32 %v709, %v728
  %v730 = vrcp.pop %v722
  %v731 = vmul.f32 %v711, %v730
  %v732 = vrcp.pop %v725
  %v733 = vmul.f32 %v713, %v732
  %v735 = vsel %vm656, %v727, 0
  %737 = vmatprep.subr.mxu0 0.0
  %738 = vmatpush1.msra.mxu0 %v318
  %739 = vmatprep.subr.mxu0 0.0
  %740 = vmatpush1.msra.mxu0 0.0
  %741 = vmatprep.subr.mxu0 0.0
  %742 = vmatpush1.msra.mxu0 0.0
  %743 = vmatprep.subr.mxu0 0.0
  %744 = vmatpush1.msra.mxu0 0.0
  %745 = vmatprep.subr.mxu0 0.0
  %746 = vmatpush1.msra.mxu0 0.0
  %747 = vmatprep.subr.mxu0 0.0
  %748 = vmatpush1.msra.mxu0 0.0
  %749 = vmatprep.subr.mxu0 0.0
  %750 = vmatpush1.msra.mxu0 0.0
  %751 = vmatprep.subr.mxu0 0.0
  %752 = vmatpush1.msra.mxu0 0.0
  %753 = vmatprep.subr.mxu0 0.0
  %754 = vmatpush1.msra.mxu0 0.0
  %755 = vmatprep.subr.mxu0 0.0
  %756 = vmatpush1.msra.mxu0 0.0
  %757 = vmatprep.subr.mxu0 0.0
  %758 = vmatpush1.msra.mxu0 0.0
  %759 = vmatprep.subr.mxu0 0.0
  %760 = vmatpush1.msra.mxu0 0.0
  %761 = vmatprep.subr.mxu0 0.0
  %762 = vmatpush1.msra.mxu0 0.0
  %763 = vmatprep.subr.mxu0 0.0
  %764 = vmatpush1.msra.mxu0 0.0
  %765 = vmatprep.subr.mxu0 0.0
  %766 = vmatpush1.msra.mxu0 0.0
  %767 = vmatprep.subr.mxu0 0.0
  %768 = vmatpush1.msra.mxu0 0.0
  %769 = vmatprep.subr.mxu0 0.0
  %770 = vmatpush1.msra.mxu0 0.0
  %771 = vmatprep.subr.mxu0 0.0
  %772 = vmatpush1.msra.mxu0 0.0
  %773 = vmatprep.subr.mxu0 0.0
  %774 = vmatpush1.msra.mxu0 0.0
  %775 = vmatprep.subr.mxu0 0.0
  %776 = vmatpush1.msra.mxu0 0.0
  %777 = vmatprep.subr.mxu0 0.0
  %778 = vmatpush1.msra.mxu0 0.0
  %779 = vmatprep.subr.mxu0 0.0
  %780 = vmatpush1.msra.mxu0 0.0
  %781 = vmatprep.subr.mxu0 0.0
  %782 = vmatpush1.msra.mxu0 0.0
  %783 = vmatprep.subr.mxu0 0.0
  %784 = vmatpush1.msra.mxu0 0.0
  %785 = vmatprep.subr.mxu0 0.0
  %786 = vmatpush1.msra.mxu0 0.0
  %787 = vmatprep.subr.mxu0 0.0
  %788 = vmatpush1.msra.mxu0 0.0
  %789 = vmatprep.subr.mxu0 0.0
  %790 = vmatpush1.msra.mxu0 0.0
  %791 = vmatprep.subr.mxu0 0.0
  %792 = vmatpush1.msra.mxu0 0.0
  %793 = vmatprep.subr.mxu0 0.0
  %794 = vmatpush1.msra.mxu0 0.0
  %795 = vmatprep.subr.mxu0 0.0
  %796 = vmatpush1.msra.mxu0 0.0
  %797 = vmatprep.subr.mxu0 0.0
  %798 = vmatpush1.msra.mxu0 0.0
  %799 = vmatprep.subr.mxu0 0.0
  %800 = vmatpush1.msra.mxu0 0.0
  %801 = vmatprep.mubr.f32.mxu0 0.0
  %802 = vmatmul.mubr.f32.gmra.mrb[0].mxu0 %v735
  %v803 = vpop.f32.mrb[0].mxu0
  %v804 = vadd.f32 0.0, %v803
  %v805 = vpop.f32.mrb[0].mxu0
  %806 = vdwg.mxu0
  %v808 = vsel %vm656, %v729, 0
  %810 = vmatprep.subr.mxu0 0.0
  %811 = vmatpush1.msra.mxu0 %v323
  %812 = vmatprep.subr.mxu0 0.0
  %813 = vmatpush1.msra.mxu0 0.0
  %814 = vmatprep.subr.mxu0 0.0
  %815 = vmatpush1.msra.mxu0 0.0
  %816 = vmatprep.subr.mxu0 0.0
  %817 = vmatpush1.msra.mxu0 0.0
  %818 = vmatprep.subr.mxu0 0.0
  %819 = vmatpush1.msra.mxu0 0.0
  %820 = vmatprep.subr.mxu0 0.0
  %821 = vmatpush1.msra.mxu0 0.0
  %822 = vmatprep.subr.mxu0 0.0
  %823 = vmatpush1.msra.mxu0 0.0
  %824 = vmatprep.subr.mxu0 0.0
  %825 = vmatpush1.msra.mxu0 0.0
  %826 = vmatprep.subr.mxu0 0.0
  %827 = vmatpush1.msra.mxu0 0.0
  %828 = vmatprep.subr.mxu0 0.0
  %829 = vmatpush1.msra.mxu0 0.0
  %830 = vmatprep.subr.mxu0 0.0
  %831 = vmatpush1.msra.mxu0 0.0
  %832 = vmatprep.subr.mxu0 0.0
  %833 = vmatpush1.msra.mxu0 0.0
  %834 = vmatprep.subr.mxu0 0.0
  %835 = vmatpush1.msra.mxu0 0.0
  %836 = vmatprep.subr.mxu0 0.0
  %837 = vmatpush1.msra.mxu0 0.0
  %838 = vmatprep.subr.mxu0 0.0
  %839 = vmatpush1.msra.mxu0 0.0
  %840 = vmatprep.subr.mxu0 0.0
  %841 = vmatpush1.msra.mxu0 0.0
  %842 = vmatprep.subr.mxu0 0.0
  %843 = vmatpush1.msra.mxu0 0.0
  %844 = vmatprep.subr.mxu0 0.0
  %845 = vmatpush1.msra.mxu0 0.0
  %846 = vmatprep.subr.mxu0 0.0
  %847 = vmatpush1.msra.mxu0 0.0
  %848 = vmatprep.subr.mxu0 0.0
  %849 = vmatpush1.msra.mxu0 0.0
  %850 = vmatprep.subr.mxu0 0.0
  %851 = vmatpush1.msra.mxu0 0.0
  %852 = vmatprep.subr.mxu0 0.0
  %853 = vmatpush1.msra.mxu0 0.0
  %854 = vmatprep.subr.mxu0 0.0
  %855 = vmatpush1.msra.mxu0 0.0
  %856 = vmatprep.subr.mxu0 0.0
  %857 = vmatpush1.msra.mxu0 0.0
  %858 = vmatprep.subr.mxu0 0.0
  %859 = vmatpush1.msra.mxu0 0.0
  %860 = vmatprep.subr.mxu0 0.0
  %861 = vmatpush1.msra.mxu0 0.0
  %862 = vmatprep.subr.mxu0 0.0
  %863 = vmatpush1.msra.mxu0 0.0
  %864 = vmatprep.subr.mxu0 0.0
  %865 = vmatpush1.msra.mxu0 0.0
  %866 = vmatprep.subr.mxu0 0.0
  %867 = vmatpush1.msra.mxu0 0.0
  %868 = vmatprep.subr.mxu0 0.0
  %869 = vmatpush1.msra.mxu0 0.0
  %870 = vmatprep.subr.mxu0 0.0
  %871 = vmatpush1.msra.mxu0 0.0
  %872 = vmatprep.subr.mxu0 0.0
  %873 = vmatpush1.msra.mxu0 0.0
  %874 = vmatprep.mubr.f32.mxu0 0.0
  %875 = vmatmul.mubr.f32.gmra.mrb[0].mxu0 %v808
  %v876 = vpop.f32.mrb[0].mxu0
  %v877 = vadd.f32 0.0, %v876
  %v878 = vpop.f32.mrb[0].mxu0
  %879 = vdwg.mxu0
  %v881 = vsel %vm656, %v731, 0
  %883 = vmatprep.subr.mxu0 0.0
  %884 = vmatpush1.msra.mxu0 %v328
  %885 = vmatprep.subr.mxu0 0.0
  %886 = vmatpush1.msra.mxu0 0.0
  %887 = vmatprep.subr.mxu0 0.0
  %888 = vmatpush1.msra.mxu0 0.0
  %889 = vmatprep.subr.mxu0 0.0
  %890 = vmatpush1.msra.mxu0 0.0
  %891 = vmatprep.subr.mxu0 0.0
  %892 = vmatpush1.msra.mxu0 0.0
  %893 = vmatprep.subr.mxu0 0.0
  %894 = vmatpush1.msra.mxu0 0.0
  %895 = vmatprep.subr.mxu0 0.0
  %896 = vmatpush1.msra.mxu0 0.0
  %897 = vmatprep.subr.mxu0 0.0
  %898 = vmatpush1.msra.mxu0 0.0
  %899 = vmatprep.subr.mxu0 0.0
  %900 = vmatpush1.msra.mxu0 0.0
  %901 = vmatprep.subr.mxu0 0.0
  %902 = vmatpush1.msra.mxu0 0.0
  %903 = vmatprep.subr.mxu0 0.0
  %904 = vmatpush1.msra.mxu0 0.0
  %905 = vmatprep.subr.mxu0 0.0
  %906 = vmatpush1.msra.mxu0 0.0
  %907 = vmatprep.subr.mxu0 0.0
  %908 = vmatpush1.msra.mxu0 0.0
  %909 = vmatprep.subr.mxu0 0.0
  %910 = vmatpush1.msra.mxu0 0.0
  %911 = vmatprep.subr.mxu0 0.0
  %912 = vmatpush1.msra.mxu0 0.0
  %913 = vmatprep.subr.mxu0 0.0
  %914 = vmatpush1.msra.mxu0 0.0
  %915 = vmatprep.subr.mxu0 0.0
  %916 = vmatpush1.msra.mxu0 0.0
  %917 = vmatprep.subr.mxu0 0.0
  %918 = vmatpush1.msra.mxu0 0.0
  %919 = vmatprep.subr.mxu0 0.0
  %920 = vmatpush1.msra.mxu0 0.0
  %921 = vmatprep.subr.mxu0 0.0
  %922 = vmatpush1.msra.mxu0 0.0
  %923 = vmatprep.subr.mxu0 0.0
  %924 = vmatpush1.msra.mxu0 0.0
  %925 = vmatprep.subr.mxu0 0.0
  %926 = vmatpush1.msra.mxu0 0.0
  %927 = vmatprep.subr.mxu0 0.0
  %928 = vmatpush1.msra.mxu0 0.0
  %929 = vmatprep.subr.mxu0 0.0
  %930 = vmatpush1.msra.mxu0 0.0
  %931 = vmatprep.subr.mxu0 0.0
  %932 = vmatpush1.msra.mxu0 0.0
  %933 = vmatprep.subr.mxu0 0.0
  %934 = vmatpush1.msra.mxu0 0.0
  %935 = vmatprep.subr.mxu0 0.0
  %936 = vmatpush1.msra.mxu0 0.0
  %937 = vmatprep.subr.mxu0 0.0
  %938 = vmatpush1.msra.mxu0 0.0
  %939 = vmatprep.subr.mxu0 0.0
  %940 = vmatpush1.msra.mxu0 0.0
  %941 = vmatprep.subr.mxu0 0.0
  %942 = vmatpush1.msra.mxu0 0.0
  %943 = vmatprep.subr.mxu0 0.0
  %944 = vmatpush1.msra.mxu0 0.0
  %945 = vmatprep.subr.mxu0 0.0
  %946 = vmatpush1.msra.mxu0 0.0
  %947 = vmatprep.mubr.f32.mxu0 0.0
  %948 = vmatmul.mubr.f32.gmra.mrb[0].mxu0 %v881
  %v949 = vpop.f32.mrb[0].mxu0
  %v950 = vadd.f32 0.0, %v949
  %v951 = vpop.f32.mrb[0].mxu0
  %952 = vdwg.mxu0
  %v954 = vsel %vm656, %v733, 0
  %956 = vmatprep.subr.mxu0 0.0
  %957 = vmatpush1.msra.mxu0 %v333
  %958 = vmatprep.subr.mxu0 0.0
  %959 = vmatpush1.msra.mxu0 0.0
  %960 = vmatprep.subr.mxu0 0.0
  %961 = vmatpush1.msra.mxu0 0.0
  %962 = vmatprep.subr.mxu0 0.0
  %963 = vmatpush1.msra.mxu0 0.0
  %964 = vmatprep.subr.mxu0 0.0
  %965 = vmatpush1.msra.mxu0 0.0
  %966 = vmatprep.subr.mxu0 0.0
  %967 = vmatpush1.msra.mxu0 0.0
  %968 = vmatprep.subr.mxu0 0.0
  %969 = vmatpush1.msra.mxu0 0.0
  %970 = vmatprep.subr.mxu0 0.0
  %971 = vmatpush1.msra.mxu0 0.0
  %972 = vmatprep.subr.mxu0 0.0
  %973 = vmatpush1.msra.mxu0 0.0
  %974 = vmatprep.subr.mxu0 0.0
  %975 = vmatpush1.msra.mxu0 0.0
  %976 = vmatprep.subr.mxu0 0.0
  %977 = vmatpush1.msra.mxu0 0.0
  %978 = vmatprep.subr.mxu0 0.0
  %979 = vmatpush1.msra.mxu0 0.0
  %980 = vmatprep.subr.mxu0 0.0
  %981 = vmatpush1.msra.mxu0 0.0
  %982 = vmatprep.subr.mxu0 0.0
  %983 = vmatpush1.msra.mxu0 0.0
  %984 = vmatprep.subr.mxu0 0.0
  %985 = vmatpush1.msra.mxu0 0.0
  %986 = vmatprep.subr.mxu0 0.0
  %987 = vmatpush1.msra.mxu0 0.0
  %988 = vmatprep.subr.mxu0 0.0
  %989 = vmatpush1.msra.mxu0 0.0
  %990 = vmatprep.subr.mxu0 0.0
  %991 = vmatpush1.msra.mxu0 0.0
  %992 = vmatprep.subr.mxu0 0.0
  %993 = vmatpush1.msra.mxu0 0.0
  %994 = vmatprep.subr.mxu0 0.0
  %995 = vmatpush1.msra.mxu0 0.0
  %996 = vmatprep.subr.mxu0 0.0
  %997 = vmatpush1.msra.mxu0 0.0
  %998 = vmatprep.subr.mxu0 0.0
  %999 = vmatpush1.msra.mxu0 0.0
  %1000 = vmatprep.subr.mxu0 0.0
  %1001 = vmatpush1.msra.mxu0 0.0
  %1002 = vmatprep.subr.mxu0 0.0
  %1003 = vmatpush1.msra.mxu0 0.0
  %1004 = vmatprep.subr.mxu0 0.0
  %1005 = vmatpush1.msra.mxu0 0.0
  %1006 = vmatprep.subr.mxu0 0.0
  %1007 = vmatpush1.msra.mxu0 0.0
  %1008 = vmatprep.subr.mxu0 0.0
  %1009 = vmatpush1.msra.mxu0 0.0
  %1010 = vmatprep.subr.mxu0 0.0
  %1011 = vmatpush1.msra.mxu0 0.0
  %1012 = vmatprep.subr.mxu0 0.0
  %1013 = vmatpush1.msra.mxu0 0.0
  %1014 = vmatprep.subr.mxu0 0.0
  %1015 = vmatpush1.msra.mxu0 0.0
  %1016 = vmatprep.subr.mxu0 0.0
  %1017 = vmatpush1.msra.mxu0 0.0
  %1018 = vmatprep.subr.mxu0 0.0
  %1019 = vmatpush1.msra.mxu0 0.0
  %1020 = vmatprep.mubr.f32.mxu0 0.0
  %1021 = vmatmul.mubr.f32.gmra.mrb[0].mxu0 %v954
  %v1022 = vpop.f32.mrb[0].mxu0
  %v1023 = vadd.f32 0.0, %v1022
  %v1024 = vpop.f32.mrb[0].mxu0
  %1025 = vdwg.mxu0
  %v1026 = vld [vmem:[%s4] sm:$0xff]
  %v1027 = vld [vmem:[%s4 + $0x8] sm:$0xff]
  %v1028 = vld [vmem:[%s4 + $0x10] sm:$0xff]
  %v1029 = vld [vmem:[%s4 + $0x18] sm:$0xff]
  %v1030 = vld [vmem:[%s4 + $0x20] sm:$0xff]
  %v1031 = vld [vmem:[%s4 + $0x28] sm:$0xff]
  %v1032 = vld [vmem:[%s4 + $0x30] sm:$0xff]
  %v1033 = vld [vmem:[%s4 + $0x38] sm:$0xff]
  %v1034 = vld [vmem:[%s4 + $0x40] sm:$0xff]
  %v1035 = vld [vmem:[%s4 + $0x48] sm:$0xff]
  %v1036 = vld [vmem:[%s4 + $0x50] sm:$0xff]
  %v1037 = vld [vmem:[%s4 + $0x58] sm:$0xff]
  %v1038 = vld [vmem:[%s4 + $0x60] sm:$0xff]
  %v1039 = vld [vmem:[%s4 + $0x68] sm:$0xff]
  %v1040 = vld [vmem:[%s4 + $0x70] sm:$0xff]
  %v1041 = vld [vmem:[%s4 + $0x78] sm:$0xff]
  %v1042 = vld [vmem:[%s4 + $0x80] sm:$0xff]
  %v1043 = vld [vmem:[%s4 + $0x88] sm:$0xff]
  %v1044 = vld [vmem:[%s4 + $0x90] sm:$0xff]
  %v1047 = vrot.slane %v1023, 7
  %vm1048 = vcmask 1041409
  %v1049 = vsel %vm1048, %v1047, %v950
  %v1050 = vsel %vm44, %v1049, 0
  %1052 = vmatprep.subr.mxu0 0.0
  %1053 = vmatpush1.msra.mxu0 %v1030
  %1054 = vmatprep.subr.mxu0 0.0
  %1055 = vmatpush1.msra.mxu0 %v1031
  %1056 = vmatprep.subr.mxu0 0.0
  %1057 = vmatpush1.msra.mxu0 %v1032
  %1058 = vmatprep.subr.mxu0 0.0
  %1059 = vmatpush1.msra.mxu0 %v1033
  %1060 = vmatprep.subr.mxu0 0.0
  %1061 = vmatpush1.msra.mxu0 0.0
  %1062 = vmatprep.subr.mxu0 0.0
  %1063 = vmatpush1.msra.mxu0 0.0
  %1064 = vmatprep.subr.mxu0 0.0
  %1065 = vmatpush1.msra.mxu0 0.0
  %1066 = vmatprep.subr.mxu0 0.0
  %1067 = vmatpush1.msra.mxu0 0.0
  %1068 = vmatprep.subr.mxu0 0.0
  %1069 = vmatpush1.msra.mxu0 0.0
  %1070 = vmatprep.subr.mxu0 0.0
  %1071 = vmatpush1.msra.mxu0 0.0
  %1072 = vmatprep.subr.mxu0 0.0
  %1073 = vmatpush1.msra.mxu0 0.0
  %1074 = vmatprep.subr.mxu0 0.0
  %1075 = vmatpush1.msra.mxu0 0.0
  %1076 = vmatprep.subr.mxu0 0.0
  %1077 = vmatpush1.msra.mxu0 0.0
  %1078 = vmatprep.subr.mxu0 0.0
  %1079 = vmatpush1.msra.mxu0 0.0
  %1080 = vmatprep.subr.mxu0 0.0
  %1081 = vmatpush1.msra.mxu0 0.0
  %1082 = vmatprep.subr.mxu0 0.0
  %1083 = vmatpush1.msra.mxu0 0.0
  %1084 = vmatprep.subr.mxu0 0.0
  %1085 = vmatpush1.msra.mxu0 0.0
  %1086 = vmatprep.subr.mxu0 0.0
  %1087 = vmatpush1.msra.mxu0 0.0
  %1088 = vmatprep.subr.mxu0 0.0
  %1089 = vmatpush1.msra.mxu0 0.0
  %1090 = vmatprep.subr.mxu0 0.0
  %1091 = vmatpush1.msra.mxu0 0.0
  %1092 = vmatprep.subr.mxu0 0.0
  %1093 = vmatpush1.msra.mxu0 0.0
  %1094 = vmatprep.subr.mxu0 0.0
  %1095 = vmatpush1.msra.mxu0 0.0
  %1096 = vmatprep.subr.mxu0 0.0
  %1097 = vmatpush1.msra.mxu0 0.0
  %1098 = vmatprep.subr.mxu0 0.0
  %1099 = vmatpush1.msra.mxu0 0.0
  %1100 = vmatprep.subr.mxu0 0.0
  %1101 = vmatpush1.msra.mxu0 0.0
  %1102 = vmatprep.subr.mxu0 0.0
  %1103 = vmatpush1.msra.mxu0 0.0
  %1104 = vmatprep.subr.mxu0 0.0
  %1105 = vmatpush1.msra.mxu0 0.0
  %1106 = vmatprep.subr.mxu0 0.0
  %1107 = vmatpush1.msra.mxu0 0.0
  %1108 = vmatprep.subr.mxu0 0.0
  %1109 = vmatpush1.msra.mxu0 0.0
  %1110 = vmatprep.subr.mxu0 0.0
  %1111 = vmatpush1.msra.mxu0 0.0
  %1112 = vmatprep.subr.mxu0 0.0
  %1113 = vmatpush1.msra.mxu0 0.0
  %1114 = vmatprep.subr.mxu0 0.0
  %1115 = vmatpush1.msra.mxu0 0.0
  %1116 = vmatprep.mubr.f32.mxu0 0.0
  %1117 = vmatmul.mubr.f32.gmra.mrb[0].mxu0 %v1050
  %v1118 = vpop.f32.mrb[0].mxu0
  %v1119 = vadd.f32 0.0, %v1118
  %v1120 = vpop.f32.mrb[0].mxu0
  %1121 = vdwg.mxu0
  %v1124 = vrot.slane %v877, 7
  %v1125 = vsel %vm1048, %v1124, %v804
  %v1126 = vsel %vm44, %v1125, 0
  %1128 = vmatprep.subr.mxu0 0.0
  %1129 = vmatpush1.msra.mxu0 %v1026
  %1130 = vmatprep.subr.mxu0 0.0
  %1131 = vmatpush1.msra.mxu0 %v1027
  %1132 = vmatprep.subr.mxu0 0.0
  %1133 = vmatpush1.msra.mxu0 %v1028
  %1134 = vmatprep.subr.mxu0 0.0
  %1135 = vmatpush1.msra.mxu0 %v1029
  %1136 = vmatprep.subr.mxu0 0.0
  %1137 = vmatpush1.msra.mxu0 0.0
  %1138 = vmatprep.subr.mxu0 0.0
  %1139 = vmatpush1.msra.mxu0 0.0
  %1140 = vmatprep.subr.mxu0 0.0
  %1141 = vmatpush1.msra.mxu0 0.0
  %1142 = vmatprep.subr.mxu0 0.0
  %1143 = vmatpush1.msra.mxu0 0.0
  %1144 = vmatprep.subr.mxu0 0.0
  %1145 = vmatpush1.msra.mxu0 0.0
  %1146 = vmatprep.subr.mxu0 0.0
  %1147 = vmatpush1.msra.mxu0 0.0
  %1148 = vmatprep.subr.mxu0 0.0
  %1149 = vmatpush1.msra.mxu0 0.0
  %1150 = vmatprep.subr.mxu0 0.0
  %1151 = vmatpush1.msra.mxu0 0.0
  %1152 = vmatprep.subr.mxu0 0.0
  %1153 = vmatpush1.msra.mxu0 0.0
  %1154 = vmatprep.subr.mxu0 0.0
  %1155 = vmatpush1.msra.mxu0 0.0
  %1156 = vmatprep.subr.mxu0 0.0
  %1157 = vmatpush1.msra.mxu0 0.0
  %1158 = vmatprep.subr.mxu0 0.0
  %1159 = vmatpush1.msra.mxu0 0.0
  %1160 = vmatprep.subr.mxu0 0.0
  %1161 = vmatpush1.msra.mxu0 0.0
  %1162 = vmatprep.subr.mxu0 0.0
  %1163 = vmatpush1.msra.mxu0 0.0
  %1164 = vmatprep.subr.mxu0 0.0
  %1165 = vmatpush1.msra.mxu0 0.0
  %1166 = vmatprep.subr.mxu0 0.0
  %1167 = vmatpush1.msra.mxu0 0.0
  %1168 = vmatprep.subr.mxu0 0.0
  %1169 = vmatpush1.msra.mxu0 0.0
  %1170 = vmatprep.subr.mxu0 0.0
  %1171 = vmatpush1.msra.mxu0 0.0
  %1172 = vmatprep.subr.mxu0 0.0
  %1173 = vmatpush1.msra.mxu0 0.0
  %1174 = vmatprep.subr.mxu0 0.0
  %1175 = vmatpush1.msra.mxu0 0.0
  %1176 = vmatprep.subr.mxu0 0.0
  %1177 = vmatpush1.msra.mxu0 0.0
  %1178 = vmatprep.subr.mxu0 0.0
  %1179 = vmatpush1.msra.mxu0 0.0
  %1180 = vmatprep.subr.mxu0 0.0
  %1181 = vmatpush1.msra.mxu0 0.0
  %1182 = vmatprep.subr.mxu0 0.0
  %1183 = vmatpush1.msra.mxu0 0.0
  %1184 = vmatprep.subr.mxu0 0.0
  %1185 = vmatpush1.msra.mxu0 0.0
  %1186 = vmatprep.subr.mxu0 0.0
  %1187 = vmatpush1.msra.mxu0 0.0
  %1188 = vmatprep.subr.mxu0 0.0
  %1189 = vmatpush1.msra.mxu0 0.0
  %1190 = vmatprep.subr.mxu0 0.0
  %1191 = vmatpush1.msra.mxu0 0.0
  %1192 = vmatprep.mubr.f32.mxu0 0.0
  %1193 = vmatmul.mubr.f32.gmra.mrb[0].mxu0 %v1126
  %v1194 = vpop.f32.mrb[0].mxu0
  %v1195 = vadd.f32 %v1119, %v1194
  %v1196 = vpop.f32.mrb[0].mxu0
  %1197 = vdwg.mxu0
  %v1198 = vlaneseq
  %v1199 = vshrl.u32 %v1198, 7
  %v1200 = vsub.s32 0, %v1199
  %v1201 = vrot.slane %v1042, %v1200
  %v1202 = vadd.f32 %v1195, %v1201
  %v1203 = vmax.f32 %v1202, 0.0
  %vm1204 = vcmask 523264
  %v1206 = vsel %vm1204, %v1203, 0
  %1208 = vmatprep.subr.mxu0 0.0
  %1209 = vmatpush1.msra.mxu0 %v1034
  %1210 = vmatprep.subr.mxu0 0.0
  %1211 = vmatpush1.msra.mxu0 %v1035
  %1212 = vmatprep.subr.mxu0 0.0
  %1213 = vmatpush1.msra.mxu0 %v1036
  %1214 = vmatprep.subr.mxu0 0.0
  %1215 = vmatpush1.msra.mxu0 %v1037
  %1216 = vmatprep.subr.mxu0 0.0
  %1217 = vmatpush1.msra.mxu0 %v1038
  %1218 = vmatprep.subr.mxu0 0.0
  %1219 = vmatpush1.msra.mxu0 %v1039
  %1220 = vmatprep.subr.mxu0 0.0
  %1221 = vmatpush1.msra.mxu0 %v1040
  %1222 = vmatprep.subr.mxu0 0.0
  %1223 = vmatpush1.msra.mxu0 %v1041
  %1224 = vmatprep.subr.mxu0 0.0
  %1225 = vmatpush1.msra.mxu0 0.0
  %1226 = vmatprep.subr.mxu0 0.0
  %1227 = vmatpush1.msra.mxu0 0.0
  %1228 = vmatprep.subr.mxu0 0.0
  %1229 = vmatpush1.msra.mxu0 0.0
  %1230 = vmatprep.subr.mxu0 0.0
  %1231 = vmatpush1.msra.mxu0 0.0
  %1232 = vmatprep.subr.mxu0 0.0
  %1233 = vmatpush1.msra.mxu0 0.0
  %1234 = vmatprep.subr.mxu0 0.0
  %1235 = vmatpush1.msra.mxu0 0.0
  %1236 = vmatprep.subr.mxu0 0.0
  %1237 = vmatpush1.msra.mxu0 0.0
  %1238 = vmatprep.subr.mxu0 0.0
  %1239 = vmatpush1.msra.mxu0 0.0
  %1240 = vmatprep.subr.mxu0 0.0
  %1241 = vmatpush1.msra.mxu0 0.0
  %1242 = vmatprep.subr.mxu0 0.0
  %1243 = vmatpush1.msra.mxu0 0.0
  %1244 = vmatprep.subr.mxu0 0.0
  %1245 = vmatpush1.msra.mxu0 0.0
  %1246 = vmatprep.subr.mxu0 0.0
  %1247 = vmatpush1.msra.mxu0 0.0
  %1248 = vmatprep.subr.mxu0 0.0
  %1249 = vmatpush1.msra.mxu0 0.0
  %1250 = vmatprep.subr.mxu0 0.0
  %1251 = vmatpush1.msra.mxu0 0.0
  %1252 = vmatprep.subr.mxu0 0.0
  %1253 = vmatpush1.msra.mxu0 0.0
  %1254 = vmatprep.subr.mxu0 0.0
  %1255 = vmatpush1.msra.mxu0 0.0
  %1256 = vmatprep.subr.mxu0 0.0
  %1257 = vmatpush1.msra.mxu0 0.0
  %1258 = vmatprep.subr.mxu0 0.0
  %1259 = vmatpush1.msra.mxu0 0.0
  %1260 = vmatprep.subr.mxu0 0.0
  %1261 = vmatpush1.msra.mxu0 0.0
  %1262 = vmatprep.subr.mxu0 0.0
  %1263 = vmatpush1.msra.mxu0 0.0
  %1264 = vmatprep.subr.mxu0 0.0
  %1265 = vmatpush1.msra.mxu0 0.0
  %1266 = vmatprep.subr.mxu0 0.0
  %1267 = vmatpush1.msra.mxu0 0.0
  %1268 = vmatprep.subr.mxu0 0.0
  %1269 = vmatpush1.msra.mxu0 0.0
  %1270 = vmatprep.subr.mxu0 0.0
  %1271 = vmatpush1.msra.mxu0 0.0
  %1272 = vmatprep.mubr.f32.mxu0 0.0
  %1273 = vmatmul.mubr.f32.gmra.mrb[0].mxu0 %v1206
  %v1274 = vpop.f32.mrb[0].mxu0
  %v1275 = vadd.f32 0.0, %v1274
  %v1276 = vpop.f32.mrb[0].mxu0
  %1277 = vdwg.mxu0
  %v1278 = vld [vmem:[%s2] sm:$0x3]
  %v1279 = vadd.f32 %v1275, %v1278
  %vm1280 = vcmask 517120
  %v1281 = vsel %vm1280, %v1279, 0.0
  %1282 = vadd.xlane.f32.xlu0 %v1281
  %v1283 = vpop.xlane.xlu0 %1282
  %v1284 = vrcp.pop 64.0
  %v1285 = vmul.f32 %v1283, %v1284
  %v1286 = vsub.f32 %v1279, %v1285
  %v1287 = vmul.f32 %v1286, %v1286
  %v1288 = vsel %vm1280, %v1287, 0.0
  %1289 = vadd.xlane.f32.xlu0 %v1288
  %v1290 = vpop.xlane.xlu0 %1289
  %v1291 = vmul.f32 %v1290, %v1284
  %v1292 = vadd.f32 %v1291, 1e-05
  %v1293 = vrsqrt.pop %v1292
  %v1294 = vmul.f32 %v1286, %v1293
  %v1295 = vlaneseq
  %v1296 = vshrl.u32 %v1295, 7
  %v1297 = vsub.s32 0, %v1296
  %v1298 = vrot.slane %v1043, %v1297
  %v1299 = vmul.f32 %v1294, %v1298
  %v1300 = vlaneseq
  %v1301 = vshrl.u32 %v1300, 7
  %v1302 = vsub.s32 0, %v1301
  %v1303 = vrot.slane %v1044, %v1302
  %v1304 = vadd.f32 %v1299, %v1303
  %1306 = vrot.lane.b32.xlu0 %v1275, 64
  %v1307 = vpop.permute.xlu0 %1306
  %v1309 = vsel %vm1204, %v1304, %v1307
  %1310 = vst [vmem:[%s5] sm:$0x3] %v1309
  // Predicated region
  $region22: #{context_attention_block.1} parent=0 // pred_check
    _
  $region23: #{context_attention_block.1} parent=0 // pred_check_branch
    %1312 = sbr.rel (0) target = $region25
  $region24: #{context_attention_block.1} parent=0 // pred_region
    _
  $region25: #{context_attention_block.1} parent=0 // pred_fallthru
    _
  // Predicated region
  $region26: #{context_attention_block.1} parent=0 // pred_check
    _
  $region27: #{context_attention_block.1} parent=0 // pred_check_branch
    %1314 = sbr.rel (0) target = $region29
  $region28: #{context_attention_block.1} parent=0 // pred_region
    _
  $region29: #{context_attention_block.1} parent=0 // pred_fallthru
    _

</llo_original>
